<compile_context>
chip_gen: v7x
topology: tpu7x:2x2x1
jax: 0.10.0
libtpu: 0.0.40
codegen_flags: <defaults>
</compile_context>

<pallas_src>
import numpy as np
import jax
import jax.numpy as jnp
from jax import lax
from jax.experimental import pallas as pl
from jax.experimental.pallas import tpu as pltpu

LPAD = 128   # padded extended-label length (2*S+1 <= LPAD)
NB = 8       # batch samples packed per grid step (one per vreg sublane)


def _round_up(x, m):
    return (x + m - 1) // m * m


def ctc_kernel(pred_sm, logits_ref, ext_ref, predlen_ref, tgtlen_ref,
               out_ref, emit_ref):
    b = pl.program_id(0)
    T = logits_ref.shape[1]          # padded time (multiple of 8)
    C = logits_ref.shape[2]          # padded classes (multiple of 128)
    Lp = ext_ref.shape[1]
    NEG = jnp.float32(-1e30)

    ext = ext_ref[...]               # (NB, Lp) int32 extended labels (blank=0 at even s)

    # ---- emissions via one-hot MXU matmuls: emit[i*T + t, s] = logp[i, t, ext[i, s]] ----
    # emit scratch is (NB*T, Lp) with row layout i*T + t (batch-major): the per-sample
    # store below is a contiguous aligned block, and the time loop reads one (NB, Lp)
    # tile per step with a sublane-strided load (stride = T).
    c_iota = lax.broadcasted_iota(jnp.int32, (C, Lp), 0)
    for i in range(NB):
        oh_i = (c_iota == ext_ref[pl.ds(i, 1), :]).astype(jnp.float32)     # (C, Lp)
        em_i = jnp.dot(logits_ref[i], oh_i,
                       preferred_element_type=jnp.float32)                  # (T, Lp)
        emit_ref[pl.ds(i * T, T), :] = em_i

    # ---- per-sample lengths as (NB, 1) vectors (one per sublane) ----
    Tn = predlen_ref[...]            # (NB, 1) int32
    Sn = tgtlen_ref[...]             # (NB, 1) int32

    # ---- transition masks ----
    s_iota = lax.broadcasted_iota(jnp.int32, (1, Lp), 1)
    shift1_ok = s_iota >= 1                                        # (1, Lp)
    same2 = ext == pltpu.roll(ext, 2, axis=1)                      # ext[s] == ext[s-2]
    is_odd = jnp.bitwise_and(s_iota, 1) == 1
    skip_ok = is_odd & (s_iota >= 3) & jnp.logical_not(same2)      # (NB, Lp)

    # ---- forward (alpha) recursion in log space, 8 samples per vreg ----
    emit0 = emit_ref[pl.ds(0, NB, stride=T), :]                    # (NB, Lp) at t = 0
    alpha0 = jnp.where(s_iota <= 1, emit0, NEG)

    def body(t, alpha):
        e_t = emit_ref[pl.ds(t, NB, stride=T), :]                  # (NB, Lp) at time t
        a1 = jnp.where(shift1_ok, pltpu.roll(alpha, 1, axis=1), NEG)
        a2 = jnp.where(skip_ok, pltpu.roll(alpha, 2, axis=1), NEG)
        m = jnp.maximum(jnp.maximum(alpha, a1), a2)
        msafe = jnp.where(m > jnp.float32(-1e29), m, 0.0)          # keep: avoids -inf - -inf
        lse = msafe + jnp.log(jnp.exp(alpha - msafe)
                              + jnp.exp(a1 - msafe)
                              + jnp.exp(a2 - msafe))
        new = e_t + lse
        # freeze each sample once past its own prediction length
        return jnp.where(t < Tn, new, alpha)

    # bound the serial loop by the longest prediction length in this block
    t_max = pred_sm[b * NB]
    for i in range(1, NB):
        t_max = jnp.maximum(t_max, pred_sm[b * NB + i])
    t_max = jnp.minimum(t_max, T)
    alpha = lax.fori_loop(1, t_max, body, alpha0)

    # ---- per-sample log-likelihood: logsumexp(alpha[2*Sn], alpha[2*Sn-1]) ----
    end1 = 2 * Sn
    end2 = end1 - 1
    l1 = jnp.sum(jnp.where(s_iota == end1, alpha, 0.0), axis=1, keepdims=True)   # (NB,1)
    l2 = jnp.sum(jnp.where(s_iota == end2, alpha, 0.0), axis=1, keepdims=True)
    l2 = jnp.where(Sn > 0, l2, NEG)
    m = jnp.maximum(l1, l2)
    msafe = jnp.where(m > jnp.float32(-1e29), m, 0.0)
    ll = msafe + jnp.log(jnp.exp(l1 - msafe) + jnp.exp(l2 - msafe))
    loss = jnp.where(ll < jnp.float32(-1e29), 0.0, -ll)            # zero_infinity=True
    out_ref[...] = jnp.zeros(out_ref.shape, jnp.float32) + loss    # (NB, 128) lane-dense


def custom_ctc_loss(logits, labels, prediction_sizes, target_sizes):
    """Forward of CustomCTCLoss. logits: (T, N, C) log-probs, labels: (N, S) int."""
    T, N, C = logits.shape
    S = labels.shape[1]
    assert 2 * S + 1 <= LPAD
    Tp = _round_up(T, 8)
    Cp = _round_up(C, 128)
    Np = _round_up(max(N, NB), NB)

    # batch-major logits, lane-padded classes, sublane-padded time, NB-padded batch
    lg = jnp.transpose(logits, (1, 0, 2)).astype(jnp.float32)            # (N, T, C)
    lg = jnp.pad(lg, ((0, Np - N), (0, Tp - T), (0, Cp - C)))

    # extended label sequence: ext[:, 2j+1] = labels[:, j]; blanks (0) elsewhere
    lab = jnp.pad(labels.astype(jnp.int32), ((0, Np - N), (0, 0)))
    ext = jnp.zeros((Np, LPAD), jnp.int32).at[:, 1:2 * S + 1:2].set(lab)

    pred = jnp.pad(prediction_sizes.astype(jnp.int32), (0, Np - N), constant_values=1)
    tgt = jnp.pad(target_sizes.astype(jnp.int32), (0, Np - N), constant_values=0)

    # VMEM budget: double-buffered logits block + emit scratch + small resident tiles.
    # (For very large T*C the logits block should instead be T-chunked; not needed here.)
    need = (2 * NB * Tp * Cp * 4 + NB * Tp * LPAD * 4
            + 4 * NB * LPAD * 4 + 2 * NB * 128 * 4)
    vmem_limit = int(min(max(4 * need, 16 * 1024 * 1024), 64 * 1024 * 1024))

    grid_spec = pltpu.PrefetchScalarGridSpec(
        num_scalar_prefetch=1,
        grid=(Np // NB,),
        in_specs=[
            pl.BlockSpec((NB, Tp, Cp), lambda b, p_sm: (b, 0, 0)),   # logits (Np,Tp,Cp)
            pl.BlockSpec((NB, LPAD), lambda b, p_sm: (b, 0)),        # extended labels
            pl.BlockSpec((NB, 1), lambda b, p_sm: (b, 0)),           # prediction lengths
            pl.BlockSpec((NB, 1), lambda b, p_sm: (b, 0)),           # target lengths
        ],
        out_specs=pl.BlockSpec((NB, 128), lambda b, p_sm: (b, 0)),
        scratch_shapes=[pltpu.VMEM((NB * Tp, LPAD), jnp.float32)],
    )
    out = pl.pallas_call(
        ctc_kernel,
        out_shape=jax.ShapeDtypeStruct((Np, 128), jnp.float32),
        grid_spec=grid_spec,
        compiler_params=pltpu.CompilerParams(
            dimension_semantics=("parallel",),            # batch blocks are independent
            vmem_limit_bytes=vmem_limit),
    )(pred, lg, ext, pred.reshape(Np, 1), tgt.reshape(Np, 1))

    per_sample = out[:N, 0]                                          # (N,) NLL, inf zeroed
    tgt_f = jnp.maximum(target_sizes.astype(jnp.float32), 1.0)
    loss = jnp.mean(per_sample / tgt_f)                              # reduction='mean'
    loss = jnp.where(jnp.isnan(loss) | jnp.isinf(loss), 0.0, loss)   # sanitize()
    # TODO(synk): the module's debug() host-side print/raise on NaN is Python control
    # flow on a scalar and is omitted (loss is already sanitized, so it never triggers).
    return loss


def _ctc_ref_numpy(log_probs_tnc, labels, input_lengths, target_lengths, blank=0):
    """Pure-numpy CTC (matches torch.nn.CTCLoss(reduction='mean', zero_infinity=True))."""
    T, N, C = log_probs_tnc.shape
    per = []
    for n in range(N):
        Tn = int(input_lengths[n]); Sn = int(target_lengths[n])
        lab = [int(x) for x in labels[n, :Sn]]
        ext = []
        for s in lab:
            ext += [blank, s]
        ext += [blank]
        L = len(ext)
        lp = log_probs_tnc[:Tn, n, :]
        alpha = np.full((L,), -np.inf)
        alpha[0] = lp[0, blank]
        if L > 1:
            alpha[1] = lp[0, ext[1]]
        for t in range(1, Tn):
            new = np.full((L,), -np.inf)
            for s in range(L):
                terms = [alpha[s]]
                if s >= 1:
                    terms.append(alpha[s - 1])
                if s >= 2 and ext[s] != blank and ext[s] != ext[s - 2]:
                    terms.append(alpha[s - 2])
                m = max(terms)
                lse = -np.inf if m == -np.inf else m + np.log(np.sum(np.exp(np.array(terms) - m)))
                new[s] = lp[t, ext[s]] + lse
            alpha = new
        terms = [alpha[L - 1]]
        if L >= 2:
            terms.append(alpha[L - 2])
        m = max(terms)
        ll = -np.inf if m == -np.inf else m + np.log(np.sum(np.exp(np.array(terms) - m)))
        nll = -ll
        if np.isinf(nll):          # zero_infinity
            nll = 0.0
        per.append(nll / max(Sn, 1))
    return float(np.mean(per))


if __name__ == "__main__":
    T, N, C, S = 16, 2, 32, 8
    key = jax.random.PRNGKey(0)
    k1, k2 = jax.random.split(key)
    # valid log-probs (the PyTorch module passes whatever it gets straight to CTCLoss)
    logits = jax.nn.log_softmax(jax.random.normal(k1, (T, N, C), jnp.float32), axis=-1)
    labels = jax.random.randint(k2, (N, S), 1, C).astype(jnp.int32)      # never blank(0)
    prediction_sizes = jnp.array([T, T - 4], dtype=jnp.int32)
    target_sizes = jnp.array([S, S - 3], dtype=jnp.int32)

    loss = custom_ctc_loss(logits, labels, prediction_sizes, target_sizes)
    loss = jax.block_until_ready(loss)

    ref = _ctc_ref_numpy(np.asarray(logits), np.asarray(labels),
                         np.asarray(prediction_sizes), np.asarray(target_sizes))
    np.testing.assert_allclose(float(loss), ref, rtol=2e-3, atol=2e-3)
    print("KERNEL_OK")
</pallas_src>

<mosaic_0001>
module attributes {stable_mosaic.version = 11 : i64} {
  func.func @ctc_kernel(%arg0: i32, %arg1: memref<8xi32, #tpu.memory_space<smem>>, %arg2: memref<8x16x128xf32, #tpu.memory_space<vmem>>, %arg3: memref<8x128xi32, #tpu.memory_space<vmem>>, %arg4: memref<8x1xi32, #tpu.memory_space<vmem>>, %arg5: memref<8x1xi32, #tpu.memory_space<vmem>>, %arg6: memref<8x128xf32, #tpu.memory_space<vmem>>, %arg7: memref<128x128xf32, #tpu.memory_space<vmem>>) attributes {dimension_semantics = [#tpu.dimension_semantics<parallel>], iteration_bounds = array<i64: 1>, scalar_prefetch = 1 : i64, scratch_operands = 1 : i64, tpu.core_type = #tpu.core_type<tc>, window_params = [{transform_indices = @transform_0, window_bounds = array<i64: 8, 16, 128>}, {transform_indices = @transform_1, window_bounds = array<i64: 8, 128>}, {transform_indices = @transform_2, window_bounds = array<i64: 8, 1>}, {transform_indices = @transform_3, window_bounds = array<i64: 8, 1>}, {transform_indices = @transform_4, window_bounds = array<i64: 8, 128>}]} {
    %c0 = arith.constant 0 : index
    %c0_0 = arith.constant 0 : index
    %0 = vector.load %arg3[%c0, %c0_0] : memref<8x128xi32, #tpu.memory_space<vmem>>, vector<8x128xi32>
    %1 = tpu.iota {dimensions = array<i32: 0>} : vector<128x128xi32>
    %c0_1 = arith.constant 0 : index
    %c0_2 = arith.constant 0 : index
    %2 = vector.load %arg3[%c0_1, %c0_2] : memref<8x128xi32, #tpu.memory_space<vmem>>, vector<1x128xi32>
    %3 = vector.broadcast %2 : vector<1x128xi32> to vector<128x128xi32>
    %4 = arith.cmpi eq, %1, %3 : vector<128x128xi32>
    %5 = arith.extui %4 : vector<128x128xi1> to vector<128x128xi32>
    %6 = arith.sitofp %5 : vector<128x128xi32> to vector<128x128xf32>
    %c0_3 = arith.constant 0 : index
    %c0_4 = arith.constant 0 : index
    %c0_5 = arith.constant 0 : index
    %7 = vector.load %arg2[%c0_3, %c0_4, %c0_5] : memref<8x16x128xf32, #tpu.memory_space<vmem>>, vector<1x16x128xf32>
    %8 = vector.shape_cast %7 : vector<1x16x128xf32> to vector<16x128xf32>
    %cst = arith.constant dense<0.000000e+00> : vector<16x128xf32>
    %9 = tpu.matmul %8, %6, %cst {dimension_numbers = #tpu.dot_dimension_numbers<[1], [0], [0], [1], [0, 0, 1, 1], [], []>} : vector<16x128xf32>, vector<128x128xf32>, vector<16x128xf32> -> vector<16x128xf32>
    %c0_6 = arith.constant 0 : index
    %c0_7 = arith.constant 0 : index
    %10 = vector.load %arg7[%c0_6, %c0_7] : memref<128x128xf32, #tpu.memory_space<vmem>>, vector<16x128xf32>
    tpu.vector_store %arg7[%c0_6, %c0_7], %9 {strides = array<i32>} : memref<128x128xf32, #tpu.memory_space<vmem>>, vector<16x128xf32>,
    %c1 = arith.constant 1 : index
    %c0_8 = arith.constant 0 : index
    %11 = vector.load %arg3[%c1, %c0_8] : memref<8x128xi32, #tpu.memory_space<vmem>>, vector<1x128xi32>
    %12 = vector.broadcast %11 : vector<1x128xi32> to vector<128x128xi32>
    %13 = arith.cmpi eq, %1, %12 : vector<128x128xi32>
    %14 = arith.extui %13 : vector<128x128xi1> to vector<128x128xi32>
    %15 = arith.sitofp %14 : vector<128x128xi32> to vector<128x128xf32>
    %c1_9 = arith.constant 1 : index
    %c0_10 = arith.constant 0 : index
    %c0_11 = arith.constant 0 : index
    %16 = vector.load %arg2[%c1_9, %c0_10, %c0_11] : memref<8x16x128xf32, #tpu.memory_space<vmem>>, vector<1x16x128xf32>
    %17 = vector.shape_cast %16 : vector<1x16x128xf32> to vector<16x128xf32>
    %cst_12 = arith.constant dense<0.000000e+00> : vector<16x128xf32>
    %18 = tpu.matmul %17, %15, %cst_12 {dimension_numbers = #tpu.dot_dimension_numbers<[1], [0], [0], [1], [0, 0, 1, 1], [], []>} : vector<16x128xf32>, vector<128x128xf32>, vector<16x128xf32> -> vector<16x128xf32>
    %c16 = arith.constant 16 : index
    %c0_13 = arith.constant 0 : index
    %19 = vector.load %arg7[%c16, %c0_13] : memref<128x128xf32, #tpu.memory_space<vmem>>, vector<16x128xf32>
    tpu.vector_store %arg7[%c16, %c0_13], %18 {strides = array<i32>} : memref<128x128xf32, #tpu.memory_space<vmem>>, vector<16x128xf32>,
    %c2 = arith.constant 2 : index
    %c0_14 = arith.constant 0 : index
    %20 = vector.load %arg3[%c2, %c0_14] : memref<8x128xi32, #tpu.memory_space<vmem>>, vector<1x128xi32>
    %21 = vector.broadcast %20 : vector<1x128xi32> to vector<128x128xi32>
    %22 = arith.cmpi eq, %1, %21 : vector<128x128xi32>
    %23 = arith.extui %22 : vector<128x128xi1> to vector<128x128xi32>
    %24 = arith.sitofp %23 : vector<128x128xi32> to vector<128x128xf32>
    %c2_15 = arith.constant 2 : index
    %c0_16 = arith.constant 0 : index
    %c0_17 = arith.constant 0 : index
    %25 = vector.load %arg2[%c2_15, %c0_16, %c0_17] : memref<8x16x128xf32, #tpu.memory_space<vmem>>, vector<1x16x128xf32>
    %26 = vector.shape_cast %25 : vector<1x16x128xf32> to vector<16x128xf32>
    %cst_18 = arith.constant dense<0.000000e+00> : vector<16x128xf32>
    %27 = tpu.matmul %26, %24, %cst_18 {dimension_numbers = #tpu.dot_dimension_numbers<[1], [0], [0], [1], [0, 0, 1, 1], [], []>} : vector<16x128xf32>, vector<128x128xf32>, vector<16x128xf32> -> vector<16x128xf32>
    %c32 = arith.constant 32 : index
    %c0_19 = arith.constant 0 : index
    %28 = vector.load %arg7[%c32, %c0_19] : memref<128x128xf32, #tpu.memory_space<vmem>>, vector<16x128xf32>
    tpu.vector_store %arg7[%c32, %c0_19], %27 {strides = array<i32>} : memref<128x128xf32, #tpu.memory_space<vmem>>, vector<16x128xf32>,
    %c3 = arith.constant 3 : index
    %c0_20 = arith.constant 0 : index
    %29 = vector.load %arg3[%c3, %c0_20] : memref<8x128xi32, #tpu.memory_space<vmem>>, vector<1x128xi32>
    %30 = vector.broadcast %29 : vector<1x128xi32> to vector<128x128xi32>
    %31 = arith.cmpi eq, %1, %30 : vector<128x128xi32>
    %32 = arith.extui %31 : vector<128x128xi1> to vector<128x128xi32>
    %33 = arith.sitofp %32 : vector<128x128xi32> to vector<128x128xf32>
    %c3_21 = arith.constant 3 : index
    %c0_22 = arith.constant 0 : index
    %c0_23 = arith.constant 0 : index
    %34 = vector.load %arg2[%c3_21, %c0_22, %c0_23] : memref<8x16x128xf32, #tpu.memory_space<vmem>>, vector<1x16x128xf32>
    %35 = vector.shape_cast %34 : vector<1x16x128xf32> to vector<16x128xf32>
    %cst_24 = arith.constant dense<0.000000e+00> : vector<16x128xf32>
    %36 = tpu.matmul %35, %33, %cst_24 {dimension_numbers = #tpu.dot_dimension_numbers<[1], [0], [0], [1], [0, 0, 1, 1], [], []>} : vector<16x128xf32>, vector<128x128xf32>, vector<16x128xf32> -> vector<16x128xf32>
    %c48 = arith.constant 48 : index
    %c0_25 = arith.constant 0 : index
    %37 = vector.load %arg7[%c48, %c0_25] : memref<128x128xf32, #tpu.memory_space<vmem>>, vector<16x128xf32>
    tpu.vector_store %arg7[%c48, %c0_25], %36 {strides = array<i32>} : memref<128x128xf32, #tpu.memory_space<vmem>>, vector<16x128xf32>,
    %c4 = arith.constant 4 : index
    %c0_26 = arith.constant 0 : index
    %38 = vector.load %arg3[%c4, %c0_26] : memref<8x128xi32, #tpu.memory_space<vmem>>, vector<1x128xi32>
    %39 = vector.broadcast %38 : vector<1x128xi32> to vector<128x128xi32>
    %40 = arith.cmpi eq, %1, %39 : vector<128x128xi32>
    %41 = arith.extui %40 : vector<128x128xi1> to vector<128x128xi32>
    %42 = arith.sitofp %41 : vector<128x128xi32> to vector<128x128xf32>
    %c4_27 = arith.constant 4 : index
    %c0_28 = arith.constant 0 : index
    %c0_29 = arith.constant 0 : index
    %43 = vector.load %arg2[%c4_27, %c0_28, %c0_29] : memref<8x16x128xf32, #tpu.memory_space<vmem>>, vector<1x16x128xf32>
    %44 = vector.shape_cast %43 : vector<1x16x128xf32> to vector<16x128xf32>
    %cst_30 = arith.constant dense<0.000000e+00> : vector<16x128xf32>
    %45 = tpu.matmul %44, %42, %cst_30 {dimension_numbers = #tpu.dot_dimension_numbers<[1], [0], [0], [1], [0, 0, 1, 1], [], []>} : vector<16x128xf32>, vector<128x128xf32>, vector<16x128xf32> -> vector<16x128xf32>
    %c64 = arith.constant 64 : index
    %c0_31 = arith.constant 0 : index
    %46 = vector.load %arg7[%c64, %c0_31] : memref<128x128xf32, #tpu.memory_space<vmem>>, vector<16x128xf32>
    tpu.vector_store %arg7[%c64, %c0_31], %45 {strides = array<i32>} : memref<128x128xf32, #tpu.memory_space<vmem>>, vector<16x128xf32>,
    %c5 = arith.constant 5 : index
    %c0_32 = arith.constant 0 : index
    %47 = vector.load %arg3[%c5, %c0_32] : memref<8x128xi32, #tpu.memory_space<vmem>>, vector<1x128xi32>
    %48 = vector.broadcast %47 : vector<1x128xi32> to vector<128x128xi32>
    %49 = arith.cmpi eq, %1, %48 : vector<128x128xi32>
    %50 = arith.extui %49 : vector<128x128xi1> to vector<128x128xi32>
    %51 = arith.sitofp %50 : vector<128x128xi32> to vector<128x128xf32>
    %c5_33 = arith.constant 5 : index
    %c0_34 = arith.constant 0 : index
    %c0_35 = arith.constant 0 : index
    %52 = vector.load %arg2[%c5_33, %c0_34, %c0_35] : memref<8x16x128xf32, #tpu.memory_space<vmem>>, vector<1x16x128xf32>
    %53 = vector.shape_cast %52 : vector<1x16x128xf32> to vector<16x128xf32>
    %cst_36 = arith.constant dense<0.000000e+00> : vector<16x128xf32>
    %54 = tpu.matmul %53, %51, %cst_36 {dimension_numbers = #tpu.dot_dimension_numbers<[1], [0], [0], [1], [0, 0, 1, 1], [], []>} : vector<16x128xf32>, vector<128x128xf32>, vector<16x128xf32> -> vector<16x128xf32>
    %c80 = arith.constant 80 : index
    %c0_37 = arith.constant 0 : index
    %55 = vector.load %arg7[%c80, %c0_37] : memref<128x128xf32, #tpu.memory_space<vmem>>, vector<16x128xf32>
    tpu.vector_store %arg7[%c80, %c0_37], %54 {strides = array<i32>} : memref<128x128xf32, #tpu.memory_space<vmem>>, vector<16x128xf32>,
    %c6 = arith.constant 6 : index
    %c0_38 = arith.constant 0 : index
    %56 = vector.load %arg3[%c6, %c0_38] : memref<8x128xi32, #tpu.memory_space<vmem>>, vector<1x128xi32>
    %57 = vector.broadcast %56 : vector<1x128xi32> to vector<128x128xi32>
    %58 = arith.cmpi eq, %1, %57 : vector<128x128xi32>
    %59 = arith.extui %58 : vector<128x128xi1> to vector<128x128xi32>
    %60 = arith.sitofp %59 : vector<128x128xi32> to vector<128x128xf32>
    %c6_39 = arith.constant 6 : index
    %c0_40 = arith.constant 0 : index
    %c0_41 = arith.constant 0 : index
    %61 = vector.load %arg2[%c6_39, %c0_40, %c0_41] : memref<8x16x128xf32, #tpu.memory_space<vmem>>, vector<1x16x128xf32>
    %62 = vector.shape_cast %61 : vector<1x16x128xf32> to vector<16x128xf32>
    %cst_42 = arith.constant dense<0.000000e+00> : vector<16x128xf32>
    %63 = tpu.matmul %62, %60, %cst_42 {dimension_numbers = #tpu.dot_dimension_numbers<[1], [0], [0], [1], [0, 0, 1, 1], [], []>} : vector<16x128xf32>, vector<128x128xf32>, vector<16x128xf32> -> vector<16x128xf32>
    %c96 = arith.constant 96 : index
    %c0_43 = arith.constant 0 : index
    %64 = vector.load %arg7[%c96, %c0_43] : memref<128x128xf32, #tpu.memory_space<vmem>>, vector<16x128xf32>
    tpu.vector_store %arg7[%c96, %c0_43], %63 {strides = array<i32>} : memref<128x128xf32, #tpu.memory_space<vmem>>, vector<16x128xf32>,
    %c7 = arith.constant 7 : index
    %c0_44 = arith.constant 0 : index
    %65 = vector.load %arg3[%c7, %c0_44] : memref<8x128xi32, #tpu.memory_space<vmem>>, vector<1x128xi32>
    %66 = vector.broadcast %65 : vector<1x128xi32> to vector<128x128xi32>
    %67 = arith.cmpi eq, %1, %66 : vector<128x128xi32>
    %68 = arith.extui %67 : vector<128x128xi1> to vector<128x128xi32>
    %69 = arith.sitofp %68 : vector<128x128xi32> to vector<128x128xf32>
    %c7_45 = arith.constant 7 : index
    %c0_46 = arith.constant 0 : index
    %c0_47 = arith.constant 0 : index
    %70 = vector.load %arg2[%c7_45, %c0_46, %c0_47] : memref<8x16x128xf32, #tpu.memory_space<vmem>>, vector<1x16x128xf32>
    %71 = vector.shape_cast %70 : vector<1x16x128xf32> to vector<16x128xf32>
    %cst_48 = arith.constant dense<0.000000e+00> : vector<16x128xf32>
    %72 = tpu.matmul %71, %69, %cst_48 {dimension_numbers = #tpu.dot_dimension_numbers<[1], [0], [0], [1], [0, 0, 1, 1], [], []>} : vector<16x128xf32>, vector<128x128xf32>, vector<16x128xf32> -> vector<16x128xf32>
    %c112 = arith.constant 112 : index
    %c0_49 = arith.constant 0 : index
    %73 = vector.load %arg7[%c112, %c0_49] : memref<128x128xf32, #tpu.memory_space<vmem>>, vector<16x128xf32>
    tpu.vector_store %arg7[%c112, %c0_49], %72 {strides = array<i32>} : memref<128x128xf32, #tpu.memory_space<vmem>>, vector<16x128xf32>,
    %c0_50 = arith.constant 0 : index
    %c0_51 = arith.constant 0 : index
    %74 = vector.load %arg4[%c0_50, %c0_51] : memref<8x1xi32, #tpu.memory_space<vmem>>, vector<8x1xi32>
    %c0_52 = arith.constant 0 : index
    %c0_53 = arith.constant 0 : index
    %75 = vector.load %arg5[%c0_52, %c0_53] : memref<8x1xi32, #tpu.memory_space<vmem>>, vector<8x1xi32>
    %76 = tpu.iota {dimensions = array<i32: 1>} : vector<1x128xi32>
    %c1_i32 = arith.constant 1 : i32
    %77 = vector.broadcast %c1_i32 : i32 to vector<1x128xi32>
    %78 = arith.cmpi sge, %76, %77 : vector<1x128xi32>
    %c2_i32 = arith.constant 2 : i32
    %79 = tpu.dynamic_rotate %0 by %c2_i32 dim 1 : vector<8x128xi32>, i32 -> vector<8x128xi32>
    %80 = arith.cmpi eq, %0, %79 : vector<8x128xi32>
    %c1_i32_54 = arith.constant 1 : i32
    %81 = vector.broadcast %c1_i32_54 : i32 to vector<1x128xi32>
    %82 = arith.andi %76, %81 : vector<1x128xi32>
    %c1_i32_55 = arith.constant 1 : i32
    %83 = vector.broadcast %c1_i32_55 : i32 to vector<1x128xi32>
    %84 = arith.cmpi eq, %82, %83 : vector<1x128xi32>
    %c3_i32 = arith.constant 3 : i32
    %85 = vector.broadcast %c3_i32 : i32 to vector<1x128xi32>
    %86 = arith.cmpi sge, %76, %85 : vector<1x128xi32>
    %87 = arith.andi %84, %86 : vector<1x128xi1>
    %cst_56 = arith.constant dense<true> : vector<8x128xi1>
    %88 = arith.xori %80, %cst_56 : vector<8x128xi1>
    %89 = vector.broadcast %87 : vector<1x128xi1> to vector<8x128xi1>
    %90 = arith.andi %89, %88 : vector<8x128xi1>
    %c0_57 = arith.constant 0 : index
    %c0_58 = arith.constant 0 : index
    %91 = tpu.strided_load %arg7[%c0_57, %c0_58] {strides = array<i32: 16, 1>} : memref<128x128xf32, #tpu.memory_space<vmem>>, vector<8x128xf32>
    %c1_i32_59 = arith.constant 1 : i32
    %92 = vector.broadcast %c1_i32_59 : i32 to vector<1x128xi32>
    %93 = arith.cmpi sle, %76, %92 : vector<1x128xi32>
    %cst_60 = arith.constant -1.000000e+30 : f32
    %94 = vector.shape_cast %93 : vector<1x128xi1> to vector<1x128xi1>
    %95 = vector.broadcast %94 : vector<1x128xi1> to vector<8x128xi1>
    %96 = vector.broadcast %cst_60 : f32 to vector<8x128xf32>
    %97 = arith.select %95, %91, %96 : vector<8x128xi1>, vector<8x128xf32>
    %c8_i32 = arith.constant 8 : i32
    %98 = arith.muli %arg0, %c8_i32 : i32
    %99 = arith.index_cast %98 : i32 to index
    %100 = memref.load %arg1[%99] : memref<8xi32, #tpu.memory_space<smem>>
    %c8_i32_61 = arith.constant 8 : i32
    %101 = arith.muli %arg0, %c8_i32_61 : i32
    %c1_i32_62 = arith.constant 1 : i32
    %102 = arith.addi %101, %c1_i32_62 : i32
    %103 = arith.index_cast %102 : i32 to index
    %104 = memref.load %arg1[%103] : memref<8xi32, #tpu.memory_space<smem>>
    %105 = arith.maxsi %100, %104 : i32
    %c8_i32_63 = arith.constant 8 : i32
    %106 = arith.muli %arg0, %c8_i32_63 : i32
    %c2_i32_64 = arith.constant 2 : i32
    %107 = arith.addi %106, %c2_i32_64 : i32
    %108 = arith.index_cast %107 : i32 to index
    %109 = memref.load %arg1[%108] : memref<8xi32, #tpu.memory_space<smem>>
    %110 = arith.maxsi %105, %109 : i32
    %c8_i32_65 = arith.constant 8 : i32
    %111 = arith.muli %arg0, %c8_i32_65 : i32
    %c3_i32_66 = arith.constant 3 : i32
    %112 = arith.addi %111, %c3_i32_66 : i32
    %113 = arith.index_cast %112 : i32 to index
    %114 = memref.load %arg1[%113] : memref<8xi32, #tpu.memory_space<smem>>
    %115 = arith.maxsi %110, %114 : i32
    %c8_i32_67 = arith.constant 8 : i32
    %116 = arith.muli %arg0, %c8_i32_67 : i32
    %c4_i32 = arith.constant 4 : i32
    %117 = arith.addi %116, %c4_i32 : i32
    %118 = arith.index_cast %117 : i32 to index
    %119 = memref.load %arg1[%118] : memref<8xi32, #tpu.memory_space<smem>>
    %120 = arith.maxsi %115, %119 : i32
    %c8_i32_68 = arith.constant 8 : i32
    %121 = arith.muli %arg0, %c8_i32_68 : i32
    %c5_i32 = arith.constant 5 : i32
    %122 = arith.addi %121, %c5_i32 : i32
    %123 = arith.index_cast %122 : i32 to index
    %124 = memref.load %arg1[%123] : memref<8xi32, #tpu.memory_space<smem>>
    %125 = arith.maxsi %120, %124 : i32
    %c8_i32_69 = arith.constant 8 : i32
    %126 = arith.muli %arg0, %c8_i32_69 : i32
    %c6_i32 = arith.constant 6 : i32
    %127 = arith.addi %126, %c6_i32 : i32
    %128 = arith.index_cast %127 : i32 to index
    %129 = memref.load %arg1[%128] : memref<8xi32, #tpu.memory_space<smem>>
    %130 = arith.maxsi %125, %129 : i32
    %c8_i32_70 = arith.constant 8 : i32
    %131 = arith.muli %arg0, %c8_i32_70 : i32
    %c7_i32 = arith.constant 7 : i32
    %132 = arith.addi %131, %c7_i32 : i32
    %133 = arith.index_cast %132 : i32 to index
    %134 = memref.load %arg1[%133] : memref<8xi32, #tpu.memory_space<smem>>
    %135 = arith.maxsi %130, %134 : i32
    %c16_i32 = arith.constant 16 : i32
    %136 = arith.minsi %135, %c16_i32 : i32
    %cst_71 = arith.constant -1.000000e+30 : f32
    %c1_i32_72 = arith.constant 1 : i32
    %137 = arith.subi %136, %c1_i32_72 : i32
    %138 = arith.addi %c1_i32_72, %137 : i32
    %c1_i32_73 = arith.constant 1 : i32
    %139 = scf.for %arg8 = %c1_i32_72 to %138 step %c1_i32_73 iter_args(%arg9 = %97) -> (vector<8x128xf32>)  : i32 {
      %184 = arith.index_cast %arg8 : i32 to index
      %c0_89 = arith.constant 0 : index
      %185 = tpu.strided_load %arg7[%184, %c0_89] {strides = array<i32: 16, 1>} : memref<128x128xf32, #tpu.memory_space<vmem>>, vector<8x128xf32>
      %c1_i32_90 = arith.constant 1 : i32
      %186 = tpu.dynamic_rotate %arg9 by %c1_i32_90 dim 1 : vector<8x128xf32>, i32 -> vector<8x128xf32>
      %187 = vector.shape_cast %78 : vector<1x128xi1> to vector<1x128xi1>
      %188 = vector.broadcast %187 : vector<1x128xi1> to vector<8x128xi1>
      %189 = vector.broadcast %cst_71 : f32 to vector<8x128xf32>
      %190 = arith.select %188, %186, %189 : vector<8x128xi1>, vector<8x128xf32>
      %c2_i32_91 = arith.constant 2 : i32
      %191 = tpu.dynamic_rotate %arg9 by %c2_i32_91 dim 1 : vector<8x128xf32>, i32 -> vector<8x128xf32>
      %192 = vector.broadcast %cst_71 : f32 to vector<8x128xf32>
      %193 = arith.select %90, %191, %192 : vector<8x128xi1>, vector<8x128xf32>
      %194 = arith.maximumf %arg9, %190 : vector<8x128xf32>
      %195 = arith.maximumf %194, %193 : vector<8x128xf32>
      %cst_92 = arith.constant -1.000000e+29 : f32
      %196 = vector.broadcast %cst_92 : f32 to vector<8x128xf32>
      %197 = arith.cmpf ogt, %195, %196 : vector<8x128xf32>
      %cst_93 = arith.constant 0.000000e+00 : f32
      %198 = vector.broadcast %cst_93 : f32 to vector<8x128xf32>
      %199 = arith.select %197, %195, %198 : vector<8x128xi1>, vector<8x128xf32>
      %200 = arith.subf %arg9, %199 : vector<8x128xf32>
      %201 = math.exp %200 : vector<8x128xf32>
      %202 = arith.subf %190, %199 : vector<8x128xf32>
      %203 = math.exp %202 : vector<8x128xf32>
      %204 = arith.addf %201, %203 : vector<8x128xf32>
      %205 = arith.subf %193, %199 : vector<8x128xf32>
      %206 = math.exp %205 : vector<8x128xf32>
      %207 = arith.addf %204, %206 : vector<8x128xf32>
      %208 = math.log %207 : vector<8x128xf32>
      %209 = arith.addf %199, %208 : vector<8x128xf32>
      %210 = arith.addf %185, %209 : vector<8x128xf32>
      %211 = vector.broadcast %arg8 : i32 to vector<8x1xi32>
      %212 = arith.cmpi slt, %211, %74 : vector<8x1xi32>
      %213 = vector.shape_cast %212 : vector<8x1xi1> to vector<8x1xi1>
      %214 = vector.broadcast %213 : vector<8x1xi1> to vector<8x128xi1>
      %215 = arith.select %214, %210, %arg9 : vector<8x128xi1>, vector<8x128xf32>
      scf.yield %215 : vector<8x128xf32>
    }
    %c2_i32_74 = arith.constant 2 : i32
    %140 = vector.broadcast %c2_i32_74 : i32 to vector<8x1xi32>
    %141 = arith.muli %140, %75 : vector<8x1xi32>
    %c1_i32_75 = arith.constant 1 : i32
    %142 = vector.broadcast %c1_i32_75 : i32 to vector<8x1xi32>
    %143 = arith.subi %141, %142 : vector<8x1xi32>
    %144 = vector.broadcast %76 : vector<1x128xi32> to vector<8x128xi32>
    %145 = vector.broadcast %141 : vector<8x1xi32> to vector<8x128xi32>
    %146 = arith.cmpi eq, %144, %145 : vector<8x128xi32>
    %cst_76 = arith.constant 0.000000e+00 : f32
    %147 = vector.broadcast %cst_76 : f32 to vector<8x128xf32>
    %148 = arith.select %146, %139, %147 : vector<8x128xi1>, vector<8x128xf32>
    %cst_77 = arith.constant dense<0.000000e+00> : vector<8xf32>
    %149 = vector.multi_reduction <add>, %148, %cst_77 [1] : vector<8x128xf32> to vector<8xf32>
    %150 = vector.shape_cast %149 : vector<8xf32> to vector<8x1xf32>
    %151 = vector.broadcast %76 : vector<1x128xi32> to vector<8x128xi32>
    %152 = vector.broadcast %143 : vector<8x1xi32> to vector<8x128xi32>
    %153 = arith.cmpi eq, %151, %152 : vector<8x128xi32>
    %cst_78 = arith.constant 0.000000e+00 : f32
    %154 = vector.broadcast %cst_78 : f32 to vector<8x128xf32>
    %155 = arith.select %153, %139, %154 : vector<8x128xi1>, vector<8x128xf32>
    %cst_79 = arith.constant dense<0.000000e+00> : vector<8xf32>
    %156 = vector.multi_reduction <add>, %155, %cst_79 [1] : vector<8x128xf32> to vector<8xf32>
    %157 = vector.shape_cast %156 : vector<8xf32> to vector<8x1xf32>
    %c0_i32 = arith.constant 0 : i32
    %158 = vector.broadcast %c0_i32 : i32 to vector<8x1xi32>
    %159 = arith.cmpi sgt, %75, %158 : vector<8x1xi32>
    %cst_80 = arith.constant -1.000000e+30 : f32
    %160 = vector.broadcast %cst_80 : f32 to vector<8x1xf32>
    %161 = arith.select %159, %157, %160 : vector<8x1xi1>, vector<8x1xf32>
    %162 = arith.maximumf %150, %161 : vector<8x1xf32>
    %cst_81 = arith.constant -1.000000e+29 : f32
    %163 = vector.broadcast %cst_81 : f32 to vector<8x1xf32>
    %164 = arith.cmpf ogt, %162, %163 : vector<8x1xf32>
    %cst_82 = arith.constant 0.000000e+00 : f32
    %165 = vector.broadcast %cst_82 : f32 to vector<8x1xf32>
    %166 = arith.select %164, %162, %165 : vector<8x1xi1>, vector<8x1xf32>
    %167 = arith.subf %150, %166 : vector<8x1xf32>
    %168 = math.exp %167 : vector<8x1xf32>
    %169 = arith.subf %161, %166 : vector<8x1xf32>
    %170 = math.exp %169 : vector<8x1xf32>
    %171 = arith.addf %168, %170 : vector<8x1xf32>
    %172 = math.log %171 : vector<8x1xf32>
    %173 = arith.addf %166, %172 : vector<8x1xf32>
    %cst_83 = arith.constant -1.000000e+29 : f32
    %174 = vector.broadcast %cst_83 : f32 to vector<8x1xf32>
    %175 = arith.cmpf olt, %173, %174 : vector<8x1xf32>
    %cst_84 = arith.constant 0.000000e+00 : f32
    %176 = vector.broadcast %cst_84 : f32 to vector<8x1xf32>
    %177 = arith.subf %176, %173 : vector<8x1xf32>
    %cst_85 = arith.constant 0.000000e+00 : f32
    %178 = vector.broadcast %cst_85 : f32 to vector<8x1xf32>
    %179 = arith.select %175, %178, %177 : vector<8x1xi1>, vector<8x1xf32>
    %cst_86 = arith.constant 0.000000e+00 : f32
    %180 = vector.broadcast %cst_86 : f32 to vector<8x128xf32>
    %181 = vector.broadcast %179 : vector<8x1xf32> to vector<8x128xf32>
    %182 = arith.addf %180, %181 : vector<8x128xf32>
    %c0_87 = arith.constant 0 : index
    %c0_88 = arith.constant 0 : index
    %183 = vector.load %arg6[%c0_87, %c0_88] : memref<8x128xf32, #tpu.memory_space<vmem>>, vector<8x128xf32>
    tpu.vector_store %arg6[%c0_87, %c0_88], %182 {strides = array<i32>} : memref<8x128xf32, #tpu.memory_space<vmem>>, vector<8x128xf32>,
    return
  }
  func.func @transform_0(%arg0: i32, %arg1: memref<8xi32, #tpu.memory_space<smem>>) -> (i32, i32, i32) {
    %c0_i32 = arith.constant 0 : i32
    %c0_i32_0 = arith.constant 0 : i32
    %c0_i32_1 = arith.constant 0 : i32
    return %arg0, %c0_i32, %c0_i32_0 : i32, i32, i32
  }
  func.func @transform_1(%arg0: i32, %arg1: memref<8xi32, #tpu.memory_space<smem>>) -> (i32, i32) {
    %c0_i32 = arith.constant 0 : i32
    %c0_i32_0 = arith.constant 0 : i32
    return %arg0, %c0_i32 : i32, i32
  }
  func.func @transform_2(%arg0: i32, %arg1: memref<8xi32, #tpu.memory_space<smem>>) -> (i32, i32) {
    %c0_i32 = arith.constant 0 : i32
    %c0_i32_0 = arith.constant 0 : i32
    return %arg0, %c0_i32 : i32, i32
  }
  func.func @transform_3(%arg0: i32, %arg1: memref<8xi32, #tpu.memory_space<smem>>) -> (i32, i32) {
    %c0_i32 = arith.constant 0 : i32
    %c0_i32_0 = arith.constant 0 : i32
    return %arg0, %c0_i32 : i32, i32
  }
  func.func @transform_4(%arg0: i32, %arg1: memref<8xi32, #tpu.memory_space<smem>>) -> (i32, i32) {
    %c0_i32 = arith.constant 0 : i32
    %c0_i32_0 = arith.constant 0 : i32
    return %arg0, %c0_i32 : i32, i32
  }
}

</mosaic_0001>

<llo_original>
// kernel: tpu_custom_call.1
$region0: #{tpu_custom_call.1}
  #allocation0 [shape = 'u32[]', space=smem, size = 0x4, offset = 0x4, fixed_abs, tag = 'smem constant byte address 0x4 - core index']
  #allocation1 [shape = 'u32[144,128]{1,0:T(1,128)}', space=vmem, size = 0x12000, scoped, tag = 'internal scratch']
  #allocation2 [shape = 'f32[128,128]{1,0:T(8,128)}', space=vmem, size = 0x10000, scoped, tag = 'scratch operand']
  #allocation3 [shape = 's32[1]{0}', space=sflag, size = 0x4, scoped, tag = 'scoped memory for tpu_custom_call.1']
  #allocation4 [shape = 'u8[512]{0}', space=smem, size = 0x200, scoped, tag = 'prefetched SMEM operand 0']
  %s0 = inlined_call_operand.vmem [shape: s32[8], index: 0, kind: input, shape index: {}]
  %s1 = inlined_call_operand.hbm [shape: f32[8,16,128], index: 1, kind: input, shape index: {}]
  %s2 = inlined_call_operand.vmem [shape: s32[8,128], index: 2, kind: input, shape index: {}]
  %s3 = inlined_call_operand.vmem [shape: s32[8,1], index: 3, kind: input, shape index: {}]
  %s4 = inlined_call_operand.vmem [shape: s32[8,1], index: 4, kind: input, shape index: {}]
  %s5 = inlined_call_operand.hbm [shape: f32[8,128], index: 5, kind: output, shape index: {}]
  %s6 = sld [smem:[#allocation0]]
  $region37: #{tpu_custom_call.1} parent=0
    _
  %s8 = ssub.s32 1, %s6
  %s9 = scalar_select 0, %s8, %s6
  %s10 = sshll.u32 %s0, 4
  %s11 = int_to_ptr.vmem [resolvable:$true] %s10
  %13 = dma.vmem_to_smem %s11, 16, [#allocation4], [#allocation3]
  %14 = dma.done [#allocation3], 16
  %15 = sfence
  $region1: #{tpu_custom_call.1} parent=0
    #allocation5 [shape = 'u8[65536]{0}', space=vmem, size = 0x10000, scoped, tag = 'input window, operand 1, single buffered']
    #allocation6 [shape = 's32[1]{0}', space=sflag, size = 0x4, scoped, tag = 'scoped memory for tpu_custom_call.1']
    #allocation7 [shape = 's32[1]{0}', space=sflag, size = 0x4, scoped, tag = 'scoped memory for tpu_custom_call.1']
    #allocation8 [shape = 'u8[4096]{0}', space=vmem, size = 0x1000, scoped, tag = 'output window, operand 0, single buffered']
    %16 = vsyncpa [#allocation6], 0
    %17 = vsyncpa [#allocation7], 0
    // Predicated region
    $region2: #{tpu_custom_call.1} parent=1 // pred_check
      _
    $region3: #{tpu_custom_call.1} parent=1 // pred_check_branch
      %19 = sbr.rel (0) target = $region5
    $region4: #{tpu_custom_call.1} parent=1 // pred_region
      %s21 = ssub.s32 2048, 2048
      %22 = vsyncadd [#allocation6], %s21
      %s23 = sshll.u32 [#allocation5], 4
      %s24 = int_to_ptr.vmem [resolvable:$true] %s23
      %29 = dma.hbm_to_vmem [thread:$0]  %s1, 2048, %s24, [#allocation6], 128, 128, 8
    $region5: #{tpu_custom_call.1} parent=1 // pred_fallthru
      _
    // Predicated region
    $region6: #{tpu_custom_call.1} parent=1 // pred_check
      _
    $region7: #{tpu_custom_call.1} parent=1 // pred_check_branch
      %31 = sbr.rel (0) target = $region9
    $region8: #{tpu_custom_call.1} parent=1 // pred_region
      _
    $region9: #{tpu_custom_call.1} parent=1 // pred_fallthru
      _
    // Predicated region
    $region10: #{tpu_custom_call.1} parent=1 // pred_check
      _
    $region11: #{tpu_custom_call.1} parent=1 // pred_check_branch
      %33 = sbr.rel (0) target = $region13
    $region12: #{tpu_custom_call.1} parent=1 // pred_region
      _
    $region13: #{tpu_custom_call.1} parent=1 // pred_fallthru
      _
    // Predicated region
    $region14: #{tpu_custom_call.1} parent=1 // pred_check
      _
    $region15: #{tpu_custom_call.1} parent=1 // pred_check_branch
      %35 = sbr.rel (0) target = $region17
    $region16: #{tpu_custom_call.1} parent=1 // pred_region
      _
    $region17: #{tpu_custom_call.1} parent=1 // pred_fallthru
      _
    // Predicated region
    $region18: #{tpu_custom_call.1} parent=1 // pred_check
      _
    $region19: #{tpu_custom_call.1} parent=1 // pred_check_branch
      %37 = sbr.rel (0) target = $region21
    $region20: #{tpu_custom_call.1} parent=1 // pred_region
      %38 = dma.done [#allocation6], 2048
    $region21: #{tpu_custom_call.1} parent=1 // pred_fallthru
      _
    %v39 = vld [vmem:[%s2] sm:$0xff]
    %v40 = vlaneseq
    %v41 = vshrl.u32 %v40, 7
    %v42 = vadd.s32 %v41, 8
    %v43 = vadd.s32 %v41, 16
    %v44 = vadd.s32 %v41, 24
    %v45 = vadd.s32 %v41, 32
    %v46 = vadd.s32 %v41, 40
    %v47 = vadd.s32 %v41, 48
    %v48 = vadd.s32 %v41, 56
    %v49 = vadd.s32 %v41, 64
    %v50 = vadd.s32 %v41, 72
    %v51 = vadd.s32 %v41, 80
    %v52 = vadd.s32 %v41, 88
    %v53 = vadd.s32 %v41, 96
    %v54 = vadd.s32 %v41, 104
    %v55 = vadd.s32 %v41, 112
    %v56 = vadd.s32 %v41, 120
    %v57 = vld [vmem:[%s2] sm:$0x1]
    %v58 = vlaneseq
    %v59 = vshrl.u32 %v58, 7
    %v60 = vsub.s32 0, %v59
    %v61 = vrot.slane %v57, %v60
    %vm62 = vcmp.eq.s32.totalorder %v41, %v61
    %vm63 = vcmp.eq.s32.totalorder %v42, %v61
    %vm64 = vcmp.eq.s32.totalorder %v43, %v61
    %vm65 = vcmp.eq.s32.totalorder %v44, %v61
    %vm66 = vcmp.eq.s32.totalorder %v45, %v61
    %vm67 = vcmp.eq.s32.totalorder %v46, %v61
    %vm68 = vcmp.eq.s32.totalorder %v47, %v61
    %vm69 = vcmp.eq.s32.totalorder %v48, %v61
    %vm70 = vcmp.eq.s32.totalorder %v49, %v61
    %vm71 = vcmp.eq.s32.totalorder %v50, %v61
    %vm72 = vcmp.eq.s32.totalorder %v51, %v61
    %vm73 = vcmp.eq.s32.totalorder %v52, %v61
    %vm74 = vcmp.eq.s32.totalorder %v53, %v61
    %vm75 = vcmp.eq.s32.totalorder %v54, %v61
    %vm76 = vcmp.eq.s32.totalorder %v55, %v61
    %vm77 = vcmp.eq.s32.totalorder %v56, %v61
    %v78 = vsel %vm62, 1, 0
    %v79 = vsel %vm63, 1, 0
    %v80 = vsel %vm64, 1, 0
    %v81 = vsel %vm65, 1, 0
    %v82 = vsel %vm66, 1, 0
    %v83 = vsel %vm67, 1, 0
    %v84 = vsel %vm68, 1, 0
    %v85 = vsel %vm69, 1, 0
    %v86 = vsel %vm70, 1, 0
    %v87 = vsel %vm71, 1, 0
    %v88 = vsel %vm72, 1, 0
    %v89 = vsel %vm73, 1, 0
    %v90 = vsel %vm74, 1, 0
    %v91 = vsel %vm75, 1, 0
    %v92 = vsel %vm76, 1, 0
    %v93 = vsel %vm77, 1, 0
    %v94 = vcvt.s32.f32 %v78
    %v95 = vcvt.s32.f32 %v79
    %v96 = vcvt.s32.f32 %v80
    %v97 = vcvt.s32.f32 %v81
    %v98 = vcvt.s32.f32 %v82
    %v99 = vcvt.s32.f32 %v83
    %v100 = vcvt.s32.f32 %v84
    %v101 = vcvt.s32.f32 %v85
    %v102 = vcvt.s32.f32 %v86
    %v103 = vcvt.s32.f32 %v87
    %v104 = vcvt.s32.f32 %v88
    %v105 = vcvt.s32.f32 %v89
    %v106 = vcvt.s32.f32 %v90
    %v107 = vcvt.s32.f32 %v91
    %v108 = vcvt.s32.f32 %v92
    %v109 = vcvt.s32.f32 %v93
    %v110 = vld [vmem:[#allocation5] sm:$0xff]
    %v111 = vld [vmem:[#allocation5 + $0x8] sm:$0xff]
    %112 = vmatprep.subr.mxu0 0.0
    %113 = vmatpush1.msra.mxu0 %v94
    %114 = vmatprep.subr.mxu0 0.0
    %115 = vmatpush1.msra.mxu0 %v95
    %116 = vmatprep.subr.mxu0 0.0
    %117 = vmatpush1.msra.mxu0 %v96
    %118 = vmatprep.subr.mxu0 0.0
    %119 = vmatpush1.msra.mxu0 %v97
    %120 = vmatprep.subr.mxu0 0.0
    %121 = vmatpush1.msra.mxu0 %v98
    %122 = vmatprep.subr.mxu0 0.0
    %123 = vmatpush1.msra.mxu0 %v99
    %124 = vmatprep.subr.mxu0 0.0
    %125 = vmatpush1.msra.mxu0 %v100
    %126 = vmatprep.subr.mxu0 0.0
    %127 = vmatpush1.msra.mxu0 %v101
    %128 = vmatprep.subr.mxu0 0.0
    %129 = vmatpush1.msra.mxu0 %v102
    %130 = vmatprep.subr.mxu0 0.0
    %131 = vmatpush1.msra.mxu0 %v103
    %132 = vmatprep.subr.mxu0 0.0
    %133 = vmatpush1.msra.mxu0 %v104
    %134 = vmatprep.subr.mxu0 0.0
    %135 = vmatpush1.msra.mxu0 %v105
    %136 = vmatprep.subr.mxu0 0.0
    %137 = vmatpush1.msra.mxu0 %v106
    %138 = vmatprep.subr.mxu0 0.0
    %139 = vmatpush1.msra.mxu0 %v107
    %140 = vmatprep.subr.mxu0 0.0
    %141 = vmatpush1.msra.mxu0 %v108
    %142 = vmatprep.subr.mxu0 0.0
    %143 = vmatpush1.msra.mxu0 %v109
    %144 = vmatprep.subr.mxu0 0.0
    %145 = vmatpush1.msra.mxu0 0.0
    %146 = vmatprep.subr.mxu0 0.0
    %147 = vmatpush1.msra.mxu0 0.0
    %148 = vmatprep.subr.mxu0 0.0
    %149 = vmatpush1.msra.mxu0 0.0
    %150 = vmatprep.subr.mxu0 0.0
    %151 = vmatpush1.msra.mxu0 0.0
    %152 = vmatprep.subr.mxu0 0.0
    %153 = vmatpush1.msra.mxu0 0.0
    %154 = vmatprep.subr.mxu0 0.0
    %155 = vmatpush1.msra.mxu0 0.0
    %156 = vmatprep.subr.mxu0 0.0
    %157 = vmatpush1.msra.mxu0 0.0
    %158 = vmatprep.subr.mxu0 0.0
    %159 = vmatpush1.msra.mxu0 0.0
    %160 = vmatprep.subr.mxu0 0.0
    %161 = vmatpush1.msra.mxu0 0.0
    %162 = vmatprep.subr.mxu0 0.0
    %163 = vmatpush1.msra.mxu0 0.0
    %164 = vmatprep.subr.mxu0 0.0
    %165 = vmatpush1.msra.mxu0 0.0
    %166 = vmatprep.subr.mxu0 0.0
    %167 = vmatpush1.msra.mxu0 0.0
    %168 = vmatprep.subr.mxu0 0.0
    %169 = vmatpush1.msra.mxu0 0.0
    %170 = vmatprep.subr.mxu0 0.0
    %171 = vmatpush1.msra.mxu0 0.0
    %172 = vmatprep.subr.mxu0 0.0
    %173 = vmatpush1.msra.mxu0 0.0
    %174 = vmatprep.subr.mxu0 0.0
    %175 = vmatpush1.msra.mxu0 0.0
    %176 = vmatprep.mubr.f32.mxu0 0.0
    %177 = vmatmul.mubr.f32.gmra.mrb[0].mxu0 %v110
    %v178 = vpop.f32.mrb[0].mxu0
    %v179 = vadd.f32 0.0, %v178
    %v180 = vpop.f32.mrb[0].mxu0
    %181 = vmatprep.mubr.f32.mxu0 0.0
    %182 = vmatmul.mubr.f32.gmra.mrb[0].mxu0 %v111
    %v183 = vpop.f32.mrb[0].mxu0
    %v184 = vadd.f32 0.0, %v183
    %v185 = vpop.f32.mrb[0].mxu0
    %186 = vdwg.mxu0
    %187 = vst [vmem:[#allocation2] sm:$0xff] %v179
    %188 = vst [vmem:[#allocation2 + $0x8] sm:$0xff] %v184
    %v189 = vld [vmem:[%s2 + $0x1] sm:$0x1]
    %v190 = vlaneseq
    %v191 = vshrl.u32 %v190, 7
    %v192 = vsub.s32 0, %v191
    %v193 = vrot.slane %v189, %v192
    %vm194 = vcmp.eq.s32.totalorder %v41, %v193
    %vm195 = vcmp.eq.s32.totalorder %v42, %v193
    %vm196 = vcmp.eq.s32.totalorder %v43, %v193
    %vm197 = vcmp.eq.s32.totalorder %v44, %v193
    %vm198 = vcmp.eq.s32.totalorder %v45, %v193
    %vm199 = vcmp.eq.s32.totalorder %v46, %v193
    %vm200 = vcmp.eq.s32.totalorder %v47, %v193
    %vm201 = vcmp.eq.s32.totalorder %v48, %v193
    %vm202 = vcmp.eq.s32.totalorder %v49, %v193
    %vm203 = vcmp.eq.s32.totalorder %v50, %v193
    %vm204 = vcmp.eq.s32.totalorder %v51, %v193
    %vm205 = vcmp.eq.s32.totalorder %v52, %v193
    %vm206 = vcmp.eq.s32.totalorder %v53, %v193
    %vm207 = vcmp.eq.s32.totalorder %v54, %v193
    %vm208 = vcmp.eq.s32.totalorder %v55, %v193
    %vm209 = vcmp.eq.s32.totalorder %v56, %v193
    %v210 = vsel %vm194, 1, 0
    %v211 = vsel %vm195, 1, 0
    %v212 = vsel %vm196, 1, 0
    %v213 = vsel %vm197, 1, 0
    %v214 = vsel %vm198, 1, 0
    %v215 = vsel %vm199, 1, 0
    %v216 = vsel %vm200, 1, 0
    %v217 = vsel %vm201, 1, 0
    %v218 = vsel %vm202, 1, 0
    %v219 = vsel %vm203, 1, 0
    %v220 = vsel %vm204, 1, 0
    %v221 = vsel %vm205, 1, 0
    %v222 = vsel %vm206, 1, 0
    %v223 = vsel %vm207, 1, 0
    %v224 = vsel %vm208, 1, 0
    %v225 = vsel %vm209, 1, 0
    %v226 = vcvt.s32.f32 %v210
    %v227 = vcvt.s32.f32 %v211
    %v228 = vcvt.s32.f32 %v212
    %v229 = vcvt.s32.f32 %v213
    %v230 = vcvt.s32.f32 %v214
    %v231 = vcvt.s32.f32 %v215
    %v232 = vcvt.s32.f32 %v216
    %v233 = vcvt.s32.f32 %v217
    %v234 = vcvt.s32.f32 %v218
    %v235 = vcvt.s32.f32 %v219
    %v236 = vcvt.s32.f32 %v220
    %v237 = vcvt.s32.f32 %v221
    %v238 = vcvt.s32.f32 %v222
    %v239 = vcvt.s32.f32 %v223
    %v240 = vcvt.s32.f32 %v224
    %v241 = vcvt.s32.f32 %v225
    %s242 = scalar_lea.vmem [#allocation5], 16
    %v243 = vld [vmem:[%s242] sm:$0xff]
    %v244 = vld [vmem:[%s242 + $0x8] sm:$0xff]
    %245 = vmatprep.subr.mxu0 0.0
    %246 = vmatpush1.msra.mxu0 %v226
    %247 = vmatprep.subr.mxu0 0.0
    %248 = vmatpush1.msra.mxu0 %v227
    %249 = vmatprep.subr.mxu0 0.0
    %250 = vmatpush1.msra.mxu0 %v228
    %251 = vmatprep.subr.mxu0 0.0
    %252 = vmatpush1.msra.mxu0 %v229
    %253 = vmatprep.subr.mxu0 0.0
    %254 = vmatpush1.msra.mxu0 %v230
    %255 = vmatprep.subr.mxu0 0.0
    %256 = vmatpush1.msra.mxu0 %v231
    %257 = vmatprep.subr.mxu0 0.0
    %258 = vmatpush1.msra.mxu0 %v232
    %259 = vmatprep.subr.mxu0 0.0
    %260 = vmatpush1.msra.mxu0 %v233
    %261 = vmatprep.subr.mxu0 0.0
    %262 = vmatpush1.msra.mxu0 %v234
    %263 = vmatprep.subr.mxu0 0.0
    %264 = vmatpush1.msra.mxu0 %v235
    %265 = vmatprep.subr.mxu0 0.0
    %266 = vmatpush1.msra.mxu0 %v236
    %267 = vmatprep.subr.mxu0 0.0
    %268 = vmatpush1.msra.mxu0 %v237
    %269 = vmatprep.subr.mxu0 0.0
    %270 = vmatpush1.msra.mxu0 %v238
    %271 = vmatprep.subr.mxu0 0.0
    %272 = vmatpush1.msra.mxu0 %v239
    %273 = vmatprep.subr.mxu0 0.0
    %274 = vmatpush1.msra.mxu0 %v240
    %275 = vmatprep.subr.mxu0 0.0
    %276 = vmatpush1.msra.mxu0 %v241
    %277 = vmatprep.subr.mxu0 0.0
    %278 = vmatpush1.msra.mxu0 0.0
    %279 = vmatprep.subr.mxu0 0.0
    %280 = vmatpush1.msra.mxu0 0.0
    %281 = vmatprep.subr.mxu0 0.0
    %282 = vmatpush1.msra.mxu0 0.0
    %283 = vmatprep.subr.mxu0 0.0
    %284 = vmatpush1.msra.mxu0 0.0
    %285 = vmatprep.subr.mxu0 0.0
    %286 = vmatpush1.msra.mxu0 0.0
    %287 = vmatprep.subr.mxu0 0.0
    %288 = vmatpush1.msra.mxu0 0.0
    %289 = vmatprep.subr.mxu0 0.0
    %290 = vmatpush1.msra.mxu0 0.0
    %291 = vmatprep.subr.mxu0 0.0
    %292 = vmatpush1.msra.mxu0 0.0
    %293 = vmatprep.subr.mxu0 0.0
    %294 = vmatpush1.msra.mxu0 0.0
    %295 = vmatprep.subr.mxu0 0.0
    %296 = vmatpush1.msra.mxu0 0.0
    %297 = vmatprep.subr.mxu0 0.0
    %298 = vmatpush1.msra.mxu0 0.0
    %299 = vmatprep.subr.mxu0 0.0
    %300 = vmatpush1.msra.mxu0 0.0
    %301 = vmatprep.subr.mxu0 0.0
    %302 = vmatpush1.msra.mxu0 0.0
    %303 = vmatprep.subr.mxu0 0.0
    %304 = vmatpush1.msra.mxu0 0.0
    %305 = vmatprep.subr.mxu0 0.0
    %306 = vmatpush1.msra.mxu0 0.0
    %307 = vmatprep.subr.mxu0 0.0
    %308 = vmatpush1.msra.mxu0 0.0
    %309 = vmatprep.mubr.f32.mxu0 0.0
    %310 = vmatmul.mubr.f32.gmra.mrb[0].mxu0 %v243
    %v311 = vpop.f32.mrb[0].mxu0
    %v312 = vadd.f32 0.0, %v311
    %v313 = vpop.f32.mrb[0].mxu0
    %314 = vmatprep.mubr.f32.mxu0 0.0
    %315 = vmatmul.mubr.f32.gmra.mrb[0].mxu0 %v244
    %v316 = vpop.f32.mrb[0].mxu0
    %v317 = vadd.f32 0.0, %v316
    %v318 = vpop.f32.mrb[0].mxu0
    %319 = vdwg.mxu0
    %320 = vst [vmem:[#allocation2 + $0x10] sm:$0xff] %v312
    %321 = vst [vmem:[#allocation2 + $0x18] sm:$0xff] %v317
    %v322 = vld [vmem:[%s2 + $0x2] sm:$0x1]
    %v323 = vlaneseq
    %v324 = vshrl.u32 %v323, 7
    %v325 = vsub.s32 0, %v324
    %v326 = vrot.slane %v322, %v325
    %vm327 = vcmp.eq.s32.totalorder %v41, %v326
    %vm328 = vcmp.eq.s32.totalorder %v42, %v326
    %vm329 = vcmp.eq.s32.totalorder %v43, %v326
    %vm330 = vcmp.eq.s32.totalorder %v44, %v326
    %vm331 = vcmp.eq.s32.totalorder %v45, %v326
    %vm332 = vcmp.eq.s32.totalorder %v46, %v326
    %vm333 = vcmp.eq.s32.totalorder %v47, %v326
    %vm334 = vcmp.eq.s32.totalorder %v48, %v326
    %vm335 = vcmp.eq.s32.totalorder %v49, %v326
    %vm336 = vcmp.eq.s32.totalorder %v50, %v326
    %vm337 = vcmp.eq.s32.totalorder %v51, %v326
    %vm338 = vcmp.eq.s32.totalorder %v52, %v326
    %vm339 = vcmp.eq.s32.totalorder %v53, %v326
    %vm340 = vcmp.eq.s32.totalorder %v54, %v326
    %vm341 = vcmp.eq.s32.totalorder %v55, %v326
    %vm342 = vcmp.eq.s32.totalorder %v56, %v326
    %v343 = vsel %vm327, 1, 0
    %v344 = vsel %vm328, 1, 0
    %v345 = vsel %vm329, 1, 0
    %v346 = vsel %vm330, 1, 0
    %v347 = vsel %vm331, 1, 0
    %v348 = vsel %vm332, 1, 0
    %v349 = vsel %vm333, 1, 0
    %v350 = vsel %vm334, 1, 0
    %v351 = vsel %vm335, 1, 0
    %v352 = vsel %vm336, 1, 0
    %v353 = vsel %vm337, 1, 0
    %v354 = vsel %vm338, 1, 0
    %v355 = vsel %vm339, 1, 0
    %v356 = vsel %vm340, 1, 0
    %v357 = vsel %vm341, 1, 0
    %v358 = vsel %vm342, 1, 0
    %v359 = vcvt.s32.f32 %v343
    %v360 = vcvt.s32.f32 %v344
    %v361 = vcvt.s32.f32 %v345
    %v362 = vcvt.s32.f32 %v346
    %v363 = vcvt.s32.f32 %v347
    %v364 = vcvt.s32.f32 %v348
    %v365 = vcvt.s32.f32 %v349
    %v366 = vcvt.s32.f32 %v350
    %v367 = vcvt.s32.f32 %v351
    %v368 = vcvt.s32.f32 %v352
    %v369 = vcvt.s32.f32 %v353
    %v370 = vcvt.s32.f32 %v354
    %v371 = vcvt.s32.f32 %v355
    %v372 = vcvt.s32.f32 %v356
    %v373 = vcvt.s32.f32 %v357
    %v374 = vcvt.s32.f32 %v358
    %s375 = scalar_lea.vmem [#allocation5], 32
    %v376 = vld [vmem:[%s375] sm:$0xff]
    %v377 = vld [vmem:[%s375 + $0x8] sm:$0xff]
    %378 = vmatprep.subr.mxu0 0.0
    %379 = vmatpush1.msra.mxu0 %v359
    %380 = vmatprep.subr.mxu0 0.0
    %381 = vmatpush1.msra.mxu0 %v360
    %382 = vmatprep.subr.mxu0 0.0
    %383 = vmatpush1.msra.mxu0 %v361
    %384 = vmatprep.subr.mxu0 0.0
    %385 = vmatpush1.msra.mxu0 %v362
    %386 = vmatprep.subr.mxu0 0.0
    %387 = vmatpush1.msra.mxu0 %v363
    %388 = vmatprep.subr.mxu0 0.0
    %389 = vmatpush1.msra.mxu0 %v364
    %390 = vmatprep.subr.mxu0 0.0
    %391 = vmatpush1.msra.mxu0 %v365
    %392 = vmatprep.subr.mxu0 0.0
    %393 = vmatpush1.msra.mxu0 %v366
    %394 = vmatprep.subr.mxu0 0.0
    %395 = vmatpush1.msra.mxu0 %v367
    %396 = vmatprep.subr.mxu0 0.0
    %397 = vmatpush1.msra.mxu0 %v368
    %398 = vmatprep.subr.mxu0 0.0
    %399 = vmatpush1.msra.mxu0 %v369
    %400 = vmatprep.subr.mxu0 0.0
    %401 = vmatpush1.msra.mxu0 %v370
    %402 = vmatprep.subr.mxu0 0.0
    %403 = vmatpush1.msra.mxu0 %v371
    %404 = vmatprep.subr.mxu0 0.0
    %405 = vmatpush1.msra.mxu0 %v372
    %406 = vmatprep.subr.mxu0 0.0
    %407 = vmatpush1.msra.mxu0 %v373
    %408 = vmatprep.subr.mxu0 0.0
    %409 = vmatpush1.msra.mxu0 %v374
    %410 = vmatprep.subr.mxu0 0.0
    %411 = vmatpush1.msra.mxu0 0.0
    %412 = vmatprep.subr.mxu0 0.0
    %413 = vmatpush1.msra.mxu0 0.0
    %414 = vmatprep.subr.mxu0 0.0
    %415 = vmatpush1.msra.mxu0 0.0
    %416 = vmatprep.subr.mxu0 0.0
    %417 = vmatpush1.msra.mxu0 0.0
    %418 = vmatprep.subr.mxu0 0.0
    %419 = vmatpush1.msra.mxu0 0.0
    %420 = vmatprep.subr.mxu0 0.0
    %421 = vmatpush1.msra.mxu0 0.0
    %422 = vmatprep.subr.mxu0 0.0
    %423 = vmatpush1.msra.mxu0 0.0
    %424 = vmatprep.subr.mxu0 0.0
    %425 = vmatpush1.msra.mxu0 0.0
    %426 = vmatprep.subr.mxu0 0.0
    %427 = vmatpush1.msra.mxu0 0.0
    %428 = vmatprep.subr.mxu0 0.0
    %429 = vmatpush1.msra.mxu0 0.0
    %430 = vmatprep.subr.mxu0 0.0
    %431 = vmatpush1.msra.mxu0 0.0
    %432 = vmatprep.subr.mxu0 0.0
    %433 = vmatpush1.msra.mxu0 0.0
    %434 = vmatprep.subr.mxu0 0.0
    %435 = vmatpush1.msra.mxu0 0.0
    %436 = vmatprep.subr.mxu0 0.0
    %437 = vmatpush1.msra.mxu0 0.0
    %438 = vmatprep.subr.mxu0 0.0
    %439 = vmatpush1.msra.mxu0 0.0
    %440 = vmatprep.subr.mxu0 0.0
    %441 = vmatpush1.msra.mxu0 0.0
    %442 = vmatprep.mubr.f32.mxu0 0.0
    %443 = vmatmul.mubr.f32.gmra.mrb[0].mxu0 %v376
    %v444 = vpop.f32.mrb[0].mxu0
    %v445 = vadd.f32 0.0, %v444
    %v446 = vpop.f32.mrb[0].mxu0
    %447 = vmatprep.mubr.f32.mxu0 0.0
    %448 = vmatmul.mubr.f32.gmra.mrb[0].mxu0 %v377
    %v449 = vpop.f32.mrb[0].mxu0
    %v450 = vadd.f32 0.0, %v449
    %v451 = vpop.f32.mrb[0].mxu0
    %452 = vdwg.mxu0
    %453 = vst [vmem:[#allocation2 + $0x20] sm:$0xff] %v445
    %454 = vst [vmem:[#allocation2 + $0x28] sm:$0xff] %v450
    %v455 = vld [vmem:[%s2 + $0x3] sm:$0x1]
    %v456 = vlaneseq
    %v457 = vshrl.u32 %v456, 7
    %v458 = vsub.s32 0, %v457
    %v459 = vrot.slane %v455, %v458
    %vm460 = vcmp.eq.s32.totalorder %v41, %v459
    %vm461 = vcmp.eq.s32.totalorder %v42, %v459
    %vm462 = vcmp.eq.s32.totalorder %v43, %v459
    %vm463 = vcmp.eq.s32.totalorder %v44, %v459
    %vm464 = vcmp.eq.s32.totalorder %v45, %v459
    %vm465 = vcmp.eq.s32.totalorder %v46, %v459
    %vm466 = vcmp.eq.s32.totalorder %v47, %v459
    %vm467 = vcmp.eq.s32.totalorder %v48, %v459
    %vm468 = vcmp.eq.s32.totalorder %v49, %v459
    %vm469 = vcmp.eq.s32.totalorder %v50, %v459
    %vm470 = vcmp.eq.s32.totalorder %v51, %v459
    %vm471 = vcmp.eq.s32.totalorder %v52, %v459
    %vm472 = vcmp.eq.s32.totalorder %v53, %v459
    %vm473 = vcmp.eq.s32.totalorder %v54, %v459
    %vm474 = vcmp.eq.s32.totalorder %v55, %v459
    %vm475 = vcmp.eq.s32.totalorder %v56, %v459
    %v476 = vsel %vm460, 1, 0
    %v477 = vsel %vm461, 1, 0
    %v478 = vsel %vm462, 1, 0
    %v479 = vsel %vm463, 1, 0
    %v480 = vsel %vm464, 1, 0
    %v481 = vsel %vm465, 1, 0
    %v482 = vsel %vm466, 1, 0
    %v483 = vsel %vm467, 1, 0
    %v484 = vsel %vm468, 1, 0
    %v485 = vsel %vm469, 1, 0
    %v486 = vsel %vm470, 1, 0
    %v487 = vsel %vm471, 1, 0
    %v488 = vsel %vm472, 1, 0
    %v489 = vsel %vm473, 1, 0
    %v490 = vsel %vm474, 1, 0
    %v491 = vsel %vm475, 1, 0
    %v492 = vcvt.s32.f32 %v476
    %v493 = vcvt.s32.f32 %v477
    %v494 = vcvt.s32.f32 %v478
    %v495 = vcvt.s32.f32 %v479
    %v496 = vcvt.s32.f32 %v480
    %v497 = vcvt.s32.f32 %v481
    %v498 = vcvt.s32.f32 %v482
    %v499 = vcvt.s32.f32 %v483
    %v500 = vcvt.s32.f32 %v484
    %v501 = vcvt.s32.f32 %v485
    %v502 = vcvt.s32.f32 %v486
    %v503 = vcvt.s32.f32 %v487
    %v504 = vcvt.s32.f32 %v488
    %v505 = vcvt.s32.f32 %v489
    %v506 = vcvt.s32.f32 %v490
    %v507 = vcvt.s32.f32 %v491
    %s508 = scalar_lea.vmem [#allocation5], 48
    %v509 = vld [vmem:[%s508] sm:$0xff]
    %v510 = vld [vmem:[%s508 + $0x8] sm:$0xff]
    %511 = vmatprep.subr.mxu0 0.0
    %512 = vmatpush1.msra.mxu0 %v492
    %513 = vmatprep.subr.mxu0 0.0
    %514 = vmatpush1.msra.mxu0 %v493
    %515 = vmatprep.subr.mxu0 0.0
    %516 = vmatpush1.msra.mxu0 %v494
    %517 = vmatprep.subr.mxu0 0.0
    %518 = vmatpush1.msra.mxu0 %v495
    %519 = vmatprep.subr.mxu0 0.0
    %520 = vmatpush1.msra.mxu0 %v496
    %521 = vmatprep.subr.mxu0 0.0
    %522 = vmatpush1.msra.mxu0 %v497
    %523 = vmatprep.subr.mxu0 0.0
    %524 = vmatpush1.msra.mxu0 %v498
    %525 = vmatprep.subr.mxu0 0.0
    %526 = vmatpush1.msra.mxu0 %v499
    %527 = vmatprep.subr.mxu0 0.0
    %528 = vmatpush1.msra.mxu0 %v500
    %529 = vmatprep.subr.mxu0 0.0
    %530 = vmatpush1.msra.mxu0 %v501
    %531 = vmatprep.subr.mxu0 0.0
    %532 = vmatpush1.msra.mxu0 %v502
    %533 = vmatprep.subr.mxu0 0.0
    %534 = vmatpush1.msra.mxu0 %v503
    %535 = vmatprep.subr.mxu0 0.0
    %536 = vmatpush1.msra.mxu0 %v504
    %537 = vmatprep.subr.mxu0 0.0
    %538 = vmatpush1.msra.mxu0 %v505
    %539 = vmatprep.subr.mxu0 0.0
    %540 = vmatpush1.msra.mxu0 %v506
    %541 = vmatprep.subr.mxu0 0.0
    %542 = vmatpush1.msra.mxu0 %v507
    %543 = vmatprep.subr.mxu0 0.0
    %544 = vmatpush1.msra.mxu0 0.0
    %545 = vmatprep.subr.mxu0 0.0
    %546 = vmatpush1.msra.mxu0 0.0
    %547 = vmatprep.subr.mxu0 0.0
    %548 = vmatpush1.msra.mxu0 0.0
    %549 = vmatprep.subr.mxu0 0.0
    %550 = vmatpush1.msra.mxu0 0.0
    %551 = vmatprep.subr.mxu0 0.0
    %552 = vmatpush1.msra.mxu0 0.0
    %553 = vmatprep.subr.mxu0 0.0
    %554 = vmatpush1.msra.mxu0 0.0
    %555 = vmatprep.subr.mxu0 0.0
    %556 = vmatpush1.msra.mxu0 0.0
    %557 = vmatprep.subr.mxu0 0.0
    %558 = vmatpush1.msra.mxu0 0.0
    %559 = vmatprep.subr.mxu0 0.0
    %560 = vmatpush1.msra.mxu0 0.0
    %561 = vmatprep.subr.mxu0 0.0
    %562 = vmatpush1.msra.mxu0 0.0
    %563 = vmatprep.subr.mxu0 0.0
    %564 = vmatpush1.msra.mxu0 0.0
    %565 = vmatprep.subr.mxu0 0.0
    %566 = vmatpush1.msra.mxu0 0.0
    %567 = vmatprep.subr.mxu0 0.0
    %568 = vmatpush1.msra.mxu0 0.0
    %569 = vmatprep.subr.mxu0 0.0
    %570 = vmatpush1.msra.mxu0 0.0
    %571 = vmatprep.subr.mxu0 0.0
    %572 = vmatpush1.msra.mxu0 0.0
    %573 = vmatprep.subr.mxu0 0.0
    %574 = vmatpush1.msra.mxu0 0.0
    %575 = vmatprep.mubr.f32.mxu0 0.0
    %576 = vmatmul.mubr.f32.gmra.mrb[0].mxu0 %v509
    %v577 = vpop.f32.mrb[0].mxu0
    %v578 = vadd.f32 0.0, %v577
    %v579 = vpop.f32.mrb[0].mxu0
    %580 = vmatprep.mubr.f32.mxu0 0.0
    %581 = vmatmul.mubr.f32.gmra.mrb[0].mxu0 %v510
    %v582 = vpop.f32.mrb[0].mxu0
    %v583 = vadd.f32 0.0, %v582
    %v584 = vpop.f32.mrb[0].mxu0
    %585 = vdwg.mxu0
    %586 = vst [vmem:[#allocation2 + $0x30] sm:$0xff] %v578
    %587 = vst [vmem:[#allocation2 + $0x38] sm:$0xff] %v583
    %v588 = vld [vmem:[%s2 + $0x4] sm:$0x1]
    %v589 = vlaneseq
    %v590 = vshrl.u32 %v589, 7
    %v591 = vsub.s32 0, %v590
    %v592 = vrot.slane %v588, %v591
    %vm593 = vcmp.eq.s32.totalorder %v41, %v592
    %vm594 = vcmp.eq.s32.totalorder %v42, %v592
    %vm595 = vcmp.eq.s32.totalorder %v43, %v592
    %vm596 = vcmp.eq.s32.totalorder %v44, %v592
    %vm597 = vcmp.eq.s32.totalorder %v45, %v592
    %vm598 = vcmp.eq.s32.totalorder %v46, %v592
    %vm599 = vcmp.eq.s32.totalorder %v47, %v592
    %vm600 = vcmp.eq.s32.totalorder %v48, %v592
    %vm601 = vcmp.eq.s32.totalorder %v49, %v592
    %vm602 = vcmp.eq.s32.totalorder %v50, %v592
    %vm603 = vcmp.eq.s32.totalorder %v51, %v592
    %vm604 = vcmp.eq.s32.totalorder %v52, %v592
    %vm605 = vcmp.eq.s32.totalorder %v53, %v592
    %vm606 = vcmp.eq.s32.totalorder %v54, %v592
    %vm607 = vcmp.eq.s32.totalorder %v55, %v592
    %vm608 = vcmp.eq.s32.totalorder %v56, %v592
    %v609 = vsel %vm593, 1, 0
    %v610 = vsel %vm594, 1, 0
    %v611 = vsel %vm595, 1, 0
    %v612 = vsel %vm596, 1, 0
    %v613 = vsel %vm597, 1, 0
    %v614 = vsel %vm598, 1, 0
    %v615 = vsel %vm599, 1, 0
    %v616 = vsel %vm600, 1, 0
    %v617 = vsel %vm601, 1, 0
    %v618 = vsel %vm602, 1, 0
    %v619 = vsel %vm603, 1, 0
    %v620 = vsel %vm604, 1, 0
    %v621 = vsel %vm605, 1, 0
    %v622 = vsel %vm606, 1, 0
    %v623 = vsel %vm607, 1, 0
    %v624 = vsel %vm608, 1, 0
    %v625 = vcvt.s32.f32 %v609
    %v626 = vcvt.s32.f32 %v610
    %v627 = vcvt.s32.f32 %v611
    %v628 = vcvt.s32.f32 %v612
    %v629 = vcvt.s32.f32 %v613
    %v630 = vcvt.s32.f32 %v614
    %v631 = vcvt.s32.f32 %v615
    %v632 = vcvt.s32.f32 %v616
    %v633 = vcvt.s32.f32 %v617
    %v634 = vcvt.s32.f32 %v618
    %v635 = vcvt.s32.f32 %v619
    %v636 = vcvt.s32.f32 %v620
    %v637 = vcvt.s32.f32 %v621
    %v638 = vcvt.s32.f32 %v622
    %v639 = vcvt.s32.f32 %v623
    %v640 = vcvt.s32.f32 %v624
    %s641 = scalar_lea.vmem [#allocation5], 64
    %v642 = vld [vmem:[%s641] sm:$0xff]
    %v643 = vld [vmem:[%s641 + $0x8] sm:$0xff]
    %644 = vmatprep.subr.mxu0 0.0
    %645 = vmatpush1.msra.mxu0 %v625
    %646 = vmatprep.subr.mxu0 0.0
    %647 = vmatpush1.msra.mxu0 %v626
    %648 = vmatprep.subr.mxu0 0.0
    %649 = vmatpush1.msra.mxu0 %v627
    %650 = vmatprep.subr.mxu0 0.0
    %651 = vmatpush1.msra.mxu0 %v628
    %652 = vmatprep.subr.mxu0 0.0
    %653 = vmatpush1.msra.mxu0 %v629
    %654 = vmatprep.subr.mxu0 0.0
    %655 = vmatpush1.msra.mxu0 %v630
    %656 = vmatprep.subr.mxu0 0.0
    %657 = vmatpush1.msra.mxu0 %v631
    %658 = vmatprep.subr.mxu0 0.0
    %659 = vmatpush1.msra.mxu0 %v632
    %660 = vmatprep.subr.mxu0 0.0
    %661 = vmatpush1.msra.mxu0 %v633
    %662 = vmatprep.subr.mxu0 0.0
    %663 = vmatpush1.msra.mxu0 %v634
    %664 = vmatprep.subr.mxu0 0.0
    %665 = vmatpush1.msra.mxu0 %v635
    %666 = vmatprep.subr.mxu0 0.0
    %667 = vmatpush1.msra.mxu0 %v636
    %668 = vmatprep.subr.mxu0 0.0
    %669 = vmatpush1.msra.mxu0 %v637
    %670 = vmatprep.subr.mxu0 0.0
    %671 = vmatpush1.msra.mxu0 %v638
    %672 = vmatprep.subr.mxu0 0.0
    %673 = vmatpush1.msra.mxu0 %v639
    %674 = vmatprep.subr.mxu0 0.0
    %675 = vmatpush1.msra.mxu0 %v640
    %676 = vmatprep.subr.mxu0 0.0
    %677 = vmatpush1.msra.mxu0 0.0
    %678 = vmatprep.subr.mxu0 0.0
    %679 = vmatpush1.msra.mxu0 0.0
    %680 = vmatprep.subr.mxu0 0.0
    %681 = vmatpush1.msra.mxu0 0.0
    %682 = vmatprep.subr.mxu0 0.0
    %683 = vmatpush1.msra.mxu0 0.0
    %684 = vmatprep.subr.mxu0 0.0
    %685 = vmatpush1.msra.mxu0 0.0
    %686 = vmatprep.subr.mxu0 0.0
    %687 = vmatpush1.msra.mxu0 0.0
    %688 = vmatprep.subr.mxu0 0.0
    %689 = vmatpush1.msra.mxu0 0.0
    %690 = vmatprep.subr.mxu0 0.0
    %691 = vmatpush1.msra.mxu0 0.0
    %692 = vmatprep.subr.mxu0 0.0
    %693 = vmatpush1.msra.mxu0 0.0
    %694 = vmatprep.subr.mxu0 0.0
    %695 = vmatpush1.msra.mxu0 0.0
    %696 = vmatprep.subr.mxu0 0.0
    %697 = vmatpush1.msra.mxu0 0.0
    %698 = vmatprep.subr.mxu0 0.0
    %699 = vmatpush1.msra.mxu0 0.0
    %700 = vmatprep.subr.mxu0 0.0
    %701 = vmatpush1.msra.mxu0 0.0
    %702 = vmatprep.subr.mxu0 0.0
    %703 = vmatpush1.msra.mxu0 0.0
    %704 = vmatprep.subr.mxu0 0.0
    %705 = vmatpush1.msra.mxu0 0.0
    %706 = vmatprep.subr.mxu0 0.0
    %707 = vmatpush1.msra.mxu0 0.0
    %708 = vmatprep.mubr.f32.mxu0 0.0
    %709 = vmatmul.mubr.f32.gmra.mrb[0].mxu0 %v642
    %v710 = vpop.f32.mrb[0].mxu0
    %v711 = vadd.f32 0.0, %v710
    %v712 = vpop.f32.mrb[0].mxu0
    %713 = vmatprep.mubr.f32.mxu0 0.0
    %714 = vmatmul.mubr.f32.gmra.mrb[0].mxu0 %v643
    %v715 = vpop.f32.mrb[0].mxu0
    %v716 = vadd.f32 0.0, %v715
    %v717 = vpop.f32.mrb[0].mxu0
    %718 = vdwg.mxu0
    %719 = vst [vmem:[#allocation2 + $0x40] sm:$0xff] %v711
    %720 = vst [vmem:[#allocation2 + $0x48] sm:$0xff] %v716
    %v721 = vld [vmem:[%s2 + $0x5] sm:$0x1]
    %v722 = vlaneseq
    %v723 = vshrl.u32 %v722, 7
    %v724 = vsub.s32 0, %v723
    %v725 = vrot.slane %v721, %v724
    %vm726 = vcmp.eq.s32.totalorder %v41, %v725
    %vm727 = vcmp.eq.s32.totalorder %v42, %v725
    %vm728 = vcmp.eq.s32.totalorder %v43, %v725
    %vm729 = vcmp.eq.s32.totalorder %v44, %v725
    %vm730 = vcmp.eq.s32.totalorder %v45, %v725
    %vm731 = vcmp.eq.s32.totalorder %v46, %v725
    %vm732 = vcmp.eq.s32.totalorder %v47, %v725
    %vm733 = vcmp.eq.s32.totalorder %v48, %v725
    %vm734 = vcmp.eq.s32.totalorder %v49, %v725
    %vm735 = vcmp.eq.s32.totalorder %v50, %v725
    %vm736 = vcmp.eq.s32.totalorder %v51, %v725
    %vm737 = vcmp.eq.s32.totalorder %v52, %v725
    %vm738 = vcmp.eq.s32.totalorder %v53, %v725
    %vm739 = vcmp.eq.s32.totalorder %v54, %v725
    %vm740 = vcmp.eq.s32.totalorder %v55, %v725
    %vm741 = vcmp.eq.s32.totalorder %v56, %v725
    %v742 = vsel %vm726, 1, 0
    %v743 = vsel %vm727, 1, 0
    %v744 = vsel %vm728, 1, 0
    %v745 = vsel %vm729, 1, 0
    %v746 = vsel %vm730, 1, 0
    %v747 = vsel %vm731, 1, 0
    %v748 = vsel %vm732, 1, 0
    %v749 = vsel %vm733, 1, 0
    %v750 = vsel %vm734, 1, 0
    %v751 = vsel %vm735, 1, 0
    %v752 = vsel %vm736, 1, 0
    %v753 = vsel %vm737, 1, 0
    %v754 = vsel %vm738, 1, 0
    %v755 = vsel %vm739, 1, 0
    %v756 = vsel %vm740, 1, 0
    %v757 = vsel %vm741, 1, 0
    %v758 = vcvt.s32.f32 %v742
    %v759 = vcvt.s32.f32 %v743
    %v760 = vcvt.s32.f32 %v744
    %v761 = vcvt.s32.f32 %v745
    %v762 = vcvt.s32.f32 %v746
    %v763 = vcvt.s32.f32 %v747
    %v764 = vcvt.s32.f32 %v748
    %v765 = vcvt.s32.f32 %v749
    %v766 = vcvt.s32.f32 %v750
    %v767 = vcvt.s32.f32 %v751
    %v768 = vcvt.s32.f32 %v752
    %v769 = vcvt.s32.f32 %v753
    %v770 = vcvt.s32.f32 %v754
    %v771 = vcvt.s32.f32 %v755
    %v772 = vcvt.s32.f32 %v756
    %v773 = vcvt.s32.f32 %v757
    %s774 = scalar_lea.vmem [#allocation5], 80
    %v775 = vld [vmem:[%s774] sm:$0xff]
    %v776 = vld [vmem:[%s774 + $0x8] sm:$0xff]
    %777 = vmatprep.subr.mxu0 0.0
    %778 = vmatpush1.msra.mxu0 %v758
    %779 = vmatprep.subr.mxu0 0.0
    %780 = vmatpush1.msra.mxu0 %v759
    %781 = vmatprep.subr.mxu0 0.0
    %782 = vmatpush1.msra.mxu0 %v760
    %783 = vmatprep.subr.mxu0 0.0
    %784 = vmatpush1.msra.mxu0 %v761
    %785 = vmatprep.subr.mxu0 0.0
    %786 = vmatpush1.msra.mxu0 %v762
    %787 = vmatprep.subr.mxu0 0.0
    %788 = vmatpush1.msra.mxu0 %v763
    %789 = vmatprep.subr.mxu0 0.0
    %790 = vmatpush1.msra.mxu0 %v764
    %791 = vmatprep.subr.mxu0 0.0
    %792 = vmatpush1.msra.mxu0 %v765
    %793 = vmatprep.subr.mxu0 0.0
    %794 = vmatpush1.msra.mxu0 %v766
    %795 = vmatprep.subr.mxu0 0.0
    %796 = vmatpush1.msra.mxu0 %v767
    %797 = vmatprep.subr.mxu0 0.0
    %798 = vmatpush1.msra.mxu0 %v768
    %799 = vmatprep.subr.mxu0 0.0
    %800 = vmatpush1.msra.mxu0 %v769
    %801 = vmatprep.subr.mxu0 0.0
    %802 = vmatpush1.msra.mxu0 %v770
    %803 = vmatprep.subr.mxu0 0.0
    %804 = vmatpush1.msra.mxu0 %v771
    %805 = vmatprep.subr.mxu0 0.0
    %806 = vmatpush1.msra.mxu0 %v772
    %807 = vmatprep.subr.mxu0 0.0
    %808 = vmatpush1.msra.mxu0 %v773
    %809 = vmatprep.subr.mxu0 0.0
    %810 = vmatpush1.msra.mxu0 0.0
    %811 = vmatprep.subr.mxu0 0.0
    %812 = vmatpush1.msra.mxu0 0.0
    %813 = vmatprep.subr.mxu0 0.0
    %814 = vmatpush1.msra.mxu0 0.0
    %815 = vmatprep.subr.mxu0 0.0
    %816 = vmatpush1.msra.mxu0 0.0
    %817 = vmatprep.subr.mxu0 0.0
    %818 = vmatpush1.msra.mxu0 0.0
    %819 = vmatprep.subr.mxu0 0.0
    %820 = vmatpush1.msra.mxu0 0.0
    %821 = vmatprep.subr.mxu0 0.0
    %822 = vmatpush1.msra.mxu0 0.0
    %823 = vmatprep.subr.mxu0 0.0
    %824 = vmatpush1.msra.mxu0 0.0
    %825 = vmatprep.subr.mxu0 0.0
    %826 = vmatpush1.msra.mxu0 0.0
    %827 = vmatprep.subr.mxu0 0.0
    %828 = vmatpush1.msra.mxu0 0.0
    %829 = vmatprep.subr.mxu0 0.0
    %830 = vmatpush1.msra.mxu0 0.0
    %831 = vmatprep.subr.mxu0 0.0
    %832 = vmatpush1.msra.mxu0 0.0
    %833 = vmatprep.subr.mxu0 0.0
    %834 = vmatpush1.msra.mxu0 0.0
    %835 = vmatprep.subr.mxu0 0.0
    %836 = vmatpush1.msra.mxu0 0.0
    %837 = vmatprep.subr.mxu0 0.0
    %838 = vmatpush1.msra.mxu0 0.0
    %839 = vmatprep.subr.mxu0 0.0
    %840 = vmatpush1.msra.mxu0 0.0
    %841 = vmatprep.mubr.f32.mxu0 0.0
    %842 = vmatmul.mubr.f32.gmra.mrb[0].mxu0 %v775
    %v843 = vpop.f32.mrb[0].mxu0
    %v844 = vadd.f32 0.0, %v843
    %v845 = vpop.f32.mrb[0].mxu0
    %846 = vmatprep.mubr.f32.mxu0 0.0
    %847 = vmatmul.mubr.f32.gmra.mrb[0].mxu0 %v776
    %v848 = vpop.f32.mrb[0].mxu0
    %v849 = vadd.f32 0.0, %v848
    %v850 = vpop.f32.mrb[0].mxu0
    %851 = vdwg.mxu0
    %852 = vst [vmem:[#allocation2 + $0x50] sm:$0xff] %v844
    %853 = vst [vmem:[#allocation2 + $0x58] sm:$0xff] %v849
    %v854 = vld [vmem:[%s2 + $0x6] sm:$0x1]
    %v855 = vlaneseq
    %v856 = vshrl.u32 %v855, 7
    %v857 = vsub.s32 0, %v856
    %v858 = vrot.slane %v854, %v857
    %vm859 = vcmp.eq.s32.totalorder %v41, %v858
    %vm860 = vcmp.eq.s32.totalorder %v42, %v858
    %vm861 = vcmp.eq.s32.totalorder %v43, %v858
    %vm862 = vcmp.eq.s32.totalorder %v44, %v858
    %vm863 = vcmp.eq.s32.totalorder %v45, %v858
    %vm864 = vcmp.eq.s32.totalorder %v46, %v858
    %vm865 = vcmp.eq.s32.totalorder %v47, %v858
    %vm866 = vcmp.eq.s32.totalorder %v48, %v858
    %vm867 = vcmp.eq.s32.totalorder %v49, %v858
    %vm868 = vcmp.eq.s32.totalorder %v50, %v858
    %vm869 = vcmp.eq.s32.totalorder %v51, %v858
    %vm870 = vcmp.eq.s32.totalorder %v52, %v858
    %vm871 = vcmp.eq.s32.totalorder %v53, %v858
    %vm872 = vcmp.eq.s32.totalorder %v54, %v858
    %vm873 = vcmp.eq.s32.totalorder %v55, %v858
    %vm874 = vcmp.eq.s32.totalorder %v56, %v858
    %v875 = vsel %vm859, 1, 0
    %v876 = vsel %vm860, 1, 0
    %v877 = vsel %vm861, 1, 0
    %v878 = vsel %vm862, 1, 0
    %v879 = vsel %vm863, 1, 0
    %v880 = vsel %vm864, 1, 0
    %v881 = vsel %vm865, 1, 0
    %v882 = vsel %vm866, 1, 0
    %v883 = vsel %vm867, 1, 0
    %v884 = vsel %vm868, 1, 0
    %v885 = vsel %vm869, 1, 0
    %v886 = vsel %vm870, 1, 0
    %v887 = vsel %vm871, 1, 0
    %v888 = vsel %vm872, 1, 0
    %v889 = vsel %vm873, 1, 0
    %v890 = vsel %vm874, 1, 0
    %v891 = vcvt.s32.f32 %v875
    %v892 = vcvt.s32.f32 %v876
    %v893 = vcvt.s32.f32 %v877
    %v894 = vcvt.s32.f32 %v878
    %v895 = vcvt.s32.f32 %v879
    %v896 = vcvt.s32.f32 %v880
    %v897 = vcvt.s32.f32 %v881
    %v898 = vcvt.s32.f32 %v882
    %v899 = vcvt.s32.f32 %v883
    %v900 = vcvt.s32.f32 %v884
    %v901 = vcvt.s32.f32 %v885
    %v902 = vcvt.s32.f32 %v886
    %v903 = vcvt.s32.f32 %v887
    %v904 = vcvt.s32.f32 %v888
    %v905 = vcvt.s32.f32 %v889
    %v906 = vcvt.s32.f32 %v890
    %s907 = scalar_lea.vmem [#allocation5], 96
    %v908 = vld [vmem:[%s907] sm:$0xff]
    %v909 = vld [vmem:[%s907 + $0x8] sm:$0xff]
    %910 = vmatprep.subr.mxu0 0.0
    %911 = vmatpush1.msra.mxu0 %v891
    %912 = vmatprep.subr.mxu0 0.0
    %913 = vmatpush1.msra.mxu0 %v892
    %914 = vmatprep.subr.mxu0 0.0
    %915 = vmatpush1.msra.mxu0 %v893
    %916 = vmatprep.subr.mxu0 0.0
    %917 = vmatpush1.msra.mxu0 %v894
    %918 = vmatprep.subr.mxu0 0.0
    %919 = vmatpush1.msra.mxu0 %v895
    %920 = vmatprep.subr.mxu0 0.0
    %921 = vmatpush1.msra.mxu0 %v896
    %922 = vmatprep.subr.mxu0 0.0
    %923 = vmatpush1.msra.mxu0 %v897
    %924 = vmatprep.subr.mxu0 0.0
    %925 = vmatpush1.msra.mxu0 %v898
    %926 = vmatprep.subr.mxu0 0.0
    %927 = vmatpush1.msra.mxu0 %v899
    %928 = vmatprep.subr.mxu0 0.0
    %929 = vmatpush1.msra.mxu0 %v900
    %930 = vmatprep.subr.mxu0 0.0
    %931 = vmatpush1.msra.mxu0 %v901
    %932 = vmatprep.subr.mxu0 0.0
    %933 = vmatpush1.msra.mxu0 %v902
    %934 = vmatprep.subr.mxu0 0.0
    %935 = vmatpush1.msra.mxu0 %v903
    %936 = vmatprep.subr.mxu0 0.0
    %937 = vmatpush1.msra.mxu0 %v904
    %938 = vmatprep.subr.mxu0 0.0
    %939 = vmatpush1.msra.mxu0 %v905
    %940 = vmatprep.subr.mxu0 0.0
    %941 = vmatpush1.msra.mxu0 %v906
    %942 = vmatprep.subr.mxu0 0.0
    %943 = vmatpush1.msra.mxu0 0.0
    %944 = vmatprep.subr.mxu0 0.0
    %945 = vmatpush1.msra.mxu0 0.0
    %946 = vmatprep.subr.mxu0 0.0
    %947 = vmatpush1.msra.mxu0 0.0
    %948 = vmatprep.subr.mxu0 0.0
    %949 = vmatpush1.msra.mxu0 0.0
    %950 = vmatprep.subr.mxu0 0.0
    %951 = vmatpush1.msra.mxu0 0.0
    %952 = vmatprep.subr.mxu0 0.0
    %953 = vmatpush1.msra.mxu0 0.0
    %954 = vmatprep.subr.mxu0 0.0
    %955 = vmatpush1.msra.mxu0 0.0
    %956 = vmatprep.subr.mxu0 0.0
    %957 = vmatpush1.msra.mxu0 0.0
    %958 = vmatprep.subr.mxu0 0.0
    %959 = vmatpush1.msra.mxu0 0.0
    %960 = vmatprep.subr.mxu0 0.0
    %961 = vmatpush1.msra.mxu0 0.0
    %962 = vmatprep.subr.mxu0 0.0
    %963 = vmatpush1.msra.mxu0 0.0
    %964 = vmatprep.subr.mxu0 0.0
    %965 = vmatpush1.msra.mxu0 0.0
    %966 = vmatprep.subr.mxu0 0.0
    %967 = vmatpush1.msra.mxu0 0.0
    %968 = vmatprep.subr.mxu0 0.0
    %969 = vmatpush1.msra.mxu0 0.0
    %970 = vmatprep.subr.mxu0 0.0
    %971 = vmatpush1.msra.mxu0 0.0
    %972 = vmatprep.subr.mxu0 0.0
    %973 = vmatpush1.msra.mxu0 0.0
    %974 = vmatprep.mubr.f32.mxu0 0.0
    %975 = vmatmul.mubr.f32.gmra.mrb[0].mxu0 %v908
    %v976 = vpop.f32.mrb[0].mxu0
    %v977 = vadd.f32 0.0, %v976
    %v978 = vpop.f32.mrb[0].mxu0
    %979 = vmatprep.mubr.f32.mxu0 0.0
    %980 = vmatmul.mubr.f32.gmra.mrb[0].mxu0 %v909
    %v981 = vpop.f32.mrb[0].mxu0
    %v982 = vadd.f32 0.0, %v981
    %v983 = vpop.f32.mrb[0].mxu0
    %984 = vdwg.mxu0
    %985 = vst [vmem:[#allocation2 + $0x60] sm:$0xff] %v977
    %986 = vst [vmem:[#allocation2 + $0x68] sm:$0xff] %v982
    %v987 = vld [vmem:[%s2 + $0x7] sm:$0x1]
    %v988 = vlaneseq
    %v989 = vshrl.u32 %v988, 7
    %v990 = vsub.s32 0, %v989
    %v991 = vrot.slane %v987, %v990
    %vm992 = vcmp.eq.s32.totalorder %v41, %v991
    %vm993 = vcmp.eq.s32.totalorder %v42, %v991
    %vm994 = vcmp.eq.s32.totalorder %v43, %v991
    %vm995 = vcmp.eq.s32.totalorder %v44, %v991
    %vm996 = vcmp.eq.s32.totalorder %v45, %v991
    %vm997 = vcmp.eq.s32.totalorder %v46, %v991
    %vm998 = vcmp.eq.s32.totalorder %v47, %v991
    %vm999 = vcmp.eq.s32.totalorder %v48, %v991
    %vm1000 = vcmp.eq.s32.totalorder %v49, %v991
    %vm1001 = vcmp.eq.s32.totalorder %v50, %v991
    %vm1002 = vcmp.eq.s32.totalorder %v51, %v991
    %vm1003 = vcmp.eq.s32.totalorder %v52, %v991
    %vm1004 = vcmp.eq.s32.totalorder %v53, %v991
    %vm1005 = vcmp.eq.s32.totalorder %v54, %v991
    %vm1006 = vcmp.eq.s32.totalorder %v55, %v991
    %vm1007 = vcmp.eq.s32.totalorder %v56, %v991
    %v1008 = vsel %vm992, 1, 0
    %v1009 = vsel %vm993, 1, 0
    %v1010 = vsel %vm994, 1, 0
    %v1011 = vsel %vm995, 1, 0
    %v1012 = vsel %vm996, 1, 0
    %v1013 = vsel %vm997, 1, 0
    %v1014 = vsel %vm998, 1, 0
    %v1015 = vsel %vm999, 1, 0
    %v1016 = vsel %vm1000, 1, 0
    %v1017 = vsel %vm1001, 1, 0
    %v1018 = vsel %vm1002, 1, 0
    %v1019 = vsel %vm1003, 1, 0
    %v1020 = vsel %vm1004, 1, 0
    %v1021 = vsel %vm1005, 1, 0
    %v1022 = vsel %vm1006, 1, 0
    %v1023 = vsel %vm1007, 1, 0
    %v1024 = vcvt.s32.f32 %v1008
    %v1025 = vcvt.s32.f32 %v1009
    %v1026 = vcvt.s32.f32 %v1010
    %v1027 = vcvt.s32.f32 %v1011
    %v1028 = vcvt.s32.f32 %v1012
    %v1029 = vcvt.s32.f32 %v1013
    %v1030 = vcvt.s32.f32 %v1014
    %v1031 = vcvt.s32.f32 %v1015
    %v1032 = vcvt.s32.f32 %v1016
    %v1033 = vcvt.s32.f32 %v1017
    %v1034 = vcvt.s32.f32 %v1018
    %v1035 = vcvt.s32.f32 %v1019
    %v1036 = vcvt.s32.f32 %v1020
    %v1037 = vcvt.s32.f32 %v1021
    %v1038 = vcvt.s32.f32 %v1022
    %v1039 = vcvt.s32.f32 %v1023
    %s1040 = scalar_lea.vmem [#allocation5], 112
    %v1041 = vld [vmem:[%s1040] sm:$0xff]
    %v1042 = vld [vmem:[%s1040 + $0x8] sm:$0xff]
    %1043 = vmatprep.subr.mxu0 0.0
    %1044 = vmatpush1.msra.mxu0 %v1024
    %1045 = vmatprep.subr.mxu0 0.0
    %1046 = vmatpush1.msra.mxu0 %v1025
    %1047 = vmatprep.subr.mxu0 0.0
    %1048 = vmatpush1.msra.mxu0 %v1026
    %1049 = vmatprep.subr.mxu0 0.0
    %1050 = vmatpush1.msra.mxu0 %v1027
    %1051 = vmatprep.subr.mxu0 0.0
    %1052 = vmatpush1.msra.mxu0 %v1028
    %1053 = vmatprep.subr.mxu0 0.0
    %1054 = vmatpush1.msra.mxu0 %v1029
    %1055 = vmatprep.subr.mxu0 0.0
    %1056 = vmatpush1.msra.mxu0 %v1030
    %1057 = vmatprep.subr.mxu0 0.0
    %1058 = vmatpush1.msra.mxu0 %v1031
    %1059 = vmatprep.subr.mxu0 0.0
    %1060 = vmatpush1.msra.mxu0 %v1032
    %1061 = vmatprep.subr.mxu0 0.0
    %1062 = vmatpush1.msra.mxu0 %v1033
    %1063 = vmatprep.subr.mxu0 0.0
    %1064 = vmatpush1.msra.mxu0 %v1034
    %1065 = vmatprep.subr.mxu0 0.0
    %1066 = vmatpush1.msra.mxu0 %v1035
    %1067 = vmatprep.subr.mxu0 0.0
    %1068 = vmatpush1.msra.mxu0 %v1036
    %1069 = vmatprep.subr.mxu0 0.0
    %1070 = vmatpush1.msra.mxu0 %v1037
    %1071 = vmatprep.subr.mxu0 0.0
    %1072 = vmatpush1.msra.mxu0 %v1038
    %1073 = vmatprep.subr.mxu0 0.0
    %1074 = vmatpush1.msra.mxu0 %v1039
    %1075 = vmatprep.subr.mxu0 0.0
    %1076 = vmatpush1.msra.mxu0 0.0
    %1077 = vmatprep.subr.mxu0 0.0
    %1078 = vmatpush1.msra.mxu0 0.0
    %1079 = vmatprep.subr.mxu0 0.0
    %1080 = vmatpush1.msra.mxu0 0.0
    %1081 = vmatprep.subr.mxu0 0.0
    %1082 = vmatpush1.msra.mxu0 0.0
    %1083 = vmatprep.subr.mxu0 0.0
    %1084 = vmatpush1.msra.mxu0 0.0
    %1085 = vmatprep.subr.mxu0 0.0
    %1086 = vmatpush1.msra.mxu0 0.0
    %1087 = vmatprep.subr.mxu0 0.0
    %1088 = vmatpush1.msra.mxu0 0.0
    %1089 = vmatprep.subr.mxu0 0.0
    %1090 = vmatpush1.msra.mxu0 0.0
    %1091 = vmatprep.subr.mxu0 0.0
    %1092 = vmatpush1.msra.mxu0 0.0
    %1093 = vmatprep.subr.mxu0 0.0
    %1094 = vmatpush1.msra.mxu0 0.0
    %1095 = vmatprep.subr.mxu0 0.0
    %1096 = vmatpush1.msra.mxu0 0.0
    %1097 = vmatprep.subr.mxu0 0.0
    %1098 = vmatpush1.msra.mxu0 0.0
    %1099 = vmatprep.subr.mxu0 0.0
    %1100 = vmatpush1.msra.mxu0 0.0
    %1101 = vmatprep.subr.mxu0 0.0
    %1102 = vmatpush1.msra.mxu0 0.0
    %1103 = vmatprep.subr.mxu0 0.0
    %1104 = vmatpush1.msra.mxu0 0.0
    %1105 = vmatprep.subr.mxu0 0.0
    %1106 = vmatpush1.msra.mxu0 0.0
    %1107 = vmatprep.mubr.f32.mxu0 0.0
    %1108 = vmatmul.mubr.f32.gmra.mrb[0].mxu0 %v1041
    %v1109 = vpop.f32.mrb[0].mxu0
    %v1110 = vadd.f32 0.0, %v1109
    %v1111 = vpop.f32.mrb[0].mxu0
    %1112 = vmatprep.mubr.f32.mxu0 0.0
    %1113 = vmatmul.mubr.f32.gmra.mrb[0].mxu0 %v1042
    %v1114 = vpop.f32.mrb[0].mxu0
    %v1115 = vadd.f32 0.0, %v1114
    %v1116 = vpop.f32.mrb[0].mxu0
    %1117 = vdwg.mxu0
    %1118 = vst [vmem:[#allocation2 + $0x70] sm:$0xff] %v1110
    %1119 = vst [vmem:[#allocation2 + $0x78] sm:$0xff] %v1115
    %v1120 = vld [vmem:[%s3] sm:$0xff]
    %v1121 = vld [vmem:[%s4] sm:$0xff]
    %v1122 = vlaneseq
    %v1123 = vand.u32 %v1122, 127
    %vm1124 = vcmp.ge.s32.totalorder %v1123, 1
    %1125 = vrot.lane.b32.xlu0 %v39, 2
    %v1126 = vpop.permute.xlu0 %1125
    %vm1127 = vcmp.eq.s32.totalorder %v39, %v1126
    %v1128 = vand.u32 %v1123, 1
    %vm1129 = vcmp.eq.s32.totalorder %v1128, 1
    %vm1130 = vcmp.ge.s32.totalorder %v1123, 3
    %vm1131 = vmand %vm1129, %vm1130
    %vm1132 = vmxor %vm1127, 1
    %v1133 = vsel %vm1131, 1, 0
    %vm1134 = vcmp.eq.s32.totalorder %v1133, 1
    %vm1135 = vmand %vm1134, %vm1132
    %v1136 = vld [vmem:[#allocation2] ss:$16 sm:$0x3]
    %v1137 = vld [vmem:[#allocation2] ss:$16 sm:$0xc]
    %v1138 = vor.u32 %v1136, %v1137
    %v1139 = vld [vmem:[#allocation2] ss:$16 sm:$0x30]
    %v1140 = vor.u32 %v1138, %v1139
    %v1141 = vld [vmem:[#allocation2] ss:$16 sm:$0xc0]
    %v1142 = vor.u32 %v1140, %v1141
    %vm1143 = vcmp.le.s32.totalorder %v1123, 1
    %v1144 = vsel %vm1143, 1, 0
    %vm1145 = vcmp.eq.s32.totalorder %v1144, 1
    %v1146 = vsel %vm1145, %v1142, -1e+30
    %s1147 = smul.u32 0, 8
    %s1148 = sld [smem:[#allocation4 + %s1147]]
    %s1149 = sadd.s32 %s1147, 1
    %s1150 = sld [smem:[#allocation4 + %s1149]]
    %p1151 = scmp.gt.s32.totalorder %s1148, %s1150
    %s1152 = scalar_select %p1151, %s1148, %s1150
    %s1153 = sadd.s32 %s1147, 2
    %s1154 = sld [smem:[#allocation4 + %s1153]]
    %p1155 = scmp.gt.s32.totalorder %s1152, %s1154
    %s1156 = scalar_select %p1155, %s1152, %s1154
    %s1157 = sadd.s32 %s1147, 3
    %s1158 = sld [smem:[#allocation4 + %s1157]]
    %p1159 = scmp.gt.s32.totalorder %s1156, %s1158
    %s1160 = scalar_select %p1159, %s1156, %s1158
    %s1161 = sadd.s32 %s1147, 4
    %s1162 = sld [smem:[#allocation4 + %s1161]]
    %p1163 = scmp.gt.s32.totalorder %s1160, %s1162
    %s1164 = scalar_select %p1163, %s1160, %s1162
    %s1165 = sadd.s32 %s1147, 5
    %s1166 = sld [smem:[#allocation4 + %s1165]]
    %p1167 = scmp.gt.s32.totalorder %s1164, %s1166
    %s1168 = scalar_select %p1167, %s1164, %s1166
    %s1169 = sadd.s32 %s1147, 6
    %s1170 = sld [smem:[#allocation4 + %s1169]]
    %p1171 = scmp.gt.s32.totalorder %s1168, %s1170
    %s1172 = scalar_select %p1171, %s1168, %s1170
    %s1173 = sadd.s32 %s1147, 7
    %s1174 = sld [smem:[#allocation4 + %s1173]]
    %p1175 = scmp.gt.s32.totalorder %s1172, %s1174
    %s1176 = scalar_select %p1175, %s1172, %s1174
    %p1177 = scmp.lt.s32.totalorder %s1176, 16
    %s1178 = scalar_select %p1177, %s1176, 16
    // While loop
    $region22: #{tpu_custom_call.1} parent=1 // loop_pre_header
      _
    $region23: #{tpu_custom_call.1} parent=1 // loop_header
      %s1180 = sphi 1, %s1182
      %p1181 = scmp.ge.s32.totalorder %s1180, %s1178
      %v1185 = vphi %v1146, %v1228
    $region24: #{tpu_custom_call.1} parent=1 // loop_header_branch
      %1184 = sbr.rel (%p1181) target = $region28
    $region25: #{tpu_custom_call.1} parent=1 // loop_body
      %s1186 = scalar_lea.vmem [#allocation2], %s1180
      %v1187 = vld [vmem:[%s1186] ss:$16 sm:$0x3]
      %v1188 = vld [vmem:[%s1186] ss:$16 sm:$0xc]
      %v1189 = vor.u32 %v1187, %v1188
      %v1190 = vld [vmem:[%s1186] ss:$16 sm:$0x30]
      %v1191 = vor.u32 %v1189, %v1190
      %v1192 = vld [vmem:[%s1186] ss:$16 sm:$0xc0]
      %v1193 = vor.u32 %v1191, %v1192
      %1194 = vrot.lane.b32.xlu0 %v1185, 1
      %v1195 = vpop.permute.xlu0 %1194
      %v1196 = vsel %vm1124, 1, 0
      %vm1197 = vcmp.eq.s32.totalorder %v1196, 1
      %v1198 = vsel %vm1197, %v1195, -1e+30
      %1199 = vrot.lane.b32.xlu0 %v1185, 2
      %v1200 = vpop.permute.xlu0 %1199
      %v1201 = vsel %vm1135, %v1200, -1e+30
      %v1202 = vmax.f32 %v1185, %v1198
      %v1203 = vmax.f32 %v1202, %v1201
      %vm1204 = vcmp.gt.f32.partialorder %v1203, -1e+29
      %v1205 = vsel %vm1204, %v1203, 0.0
      %v1206 = vsub.f32 %v1185, %v1205
      %v1207 = vmul.f32 %v1206, 1.442695
      %v1208 = vpow.pop %v1207
      %v1209 = vsub.f32 %v1198, %v1205
      %v1210 = vmul.f32 %v1209, 1.442695
      %v1211 = vpow.pop %v1210
      %v1212 = vadd.f32 %v1208, %v1211
      %v1213 = vsub.f32 %v1201, %v1205
      %v1214 = vmul.f32 %v1213, 1.442695
      %v1215 = vpow.pop %v1214
      %v1216 = vadd.f32 %v1212, %v1215
      %v1217 = vlog2.pop %v1216
      %v1218 = vmul.f32 %v1217, 0.6931472
      %v1219 = vadd.f32 %v1205, %v1218
      %v1220 = vadd.f32 %v1193, %v1219
      %v1221 = vstv %s1180
      %vm1222 = vcmp.lt.s32.totalorder %v1221, %v1120
      %v1223 = vsel %vm1222, 1, 0
      %1224 = vset.pattern.permute.xlu0 0
      %1225 = vperm.xlu0 %1224, %v1223
      %v1226 = vpop.permute.xlu0 %1225
      %vm1227 = vcmp.eq.s32.totalorder %v1226, 1
      %v1228 = vsel %vm1227, %v1220, %v1185
    $region26: #{tpu_custom_call.1} parent=1 // loop_footer
      %s1182 = sadd.s32 %s1180, 1
    $region27: #{tpu_custom_call.1} parent=1 // loop_footer_branch
      %1179 = sbr.rel target = $region23
    $region28: #{tpu_custom_call.1} parent=1 // loop_exit
      _
    %v1229 = vmul.u32 %v1121, 2
    %v1230 = vsub.s32 %v1229, 1
    %1231 = vset.pattern.permute.xlu0 0
    %1232 = vperm.xlu0 %1231, %v1229
    %v1233 = vpop.permute.xlu0 %1232
    %vm1234 = vcmp.eq.s32.totalorder %v1123, %v1233
    %v1235 = vsel %vm1234, %v1185, 0.0
    %1236 = vadd.xlane.f32.xlu0 %v1235
    %v1237 = vpop.xlane.xlu0 %1236
    %1238 = vset.pattern.permute.xlu0 0
    %1239 = vperm.xlu0 %1238, %v1230
    %v1240 = vpop.permute.xlu0 %1239
    %vm1241 = vcmp.eq.s32.totalorder %v1123, %v1240
    %v1242 = vsel %vm1241, %v1185, 0.0
    %1243 = vadd.xlane.f32.xlu0 %v1242
    %v1244 = vpop.xlane.xlu0 %1243
    %vm1245 = vcmp.gt.s32.totalorder %v1121, 0
    %v1246 = vsel %vm1245, %v1244, -1e+30
    %v1247 = vmax.f32 %v1237, %v1246
    %vm1248 = vcmp.gt.f32.partialorder %v1247, -1e+29
    %v1249 = vsel %vm1248, %v1247, 0.0
    %v1250 = vsub.f32 %v1237, %v1249
    %v1251 = vmul.f32 %v1250, 1.442695
    %v1252 = vpow.pop %v1251
    %v1253 = vsub.f32 %v1246, %v1249
    %v1254 = vmul.f32 %v1253, 1.442695
    %v1255 = vpow.pop %v1254
    %v1256 = vadd.f32 %v1252, %v1255
    %v1257 = vlog2.pop %v1256
    %v1258 = vmul.f32 %v1257, 0.6931472
    %v1259 = vadd.f32 %v1249, %v1258
    %vm1260 = vcmp.lt.f32.partialorder %v1259, -1e+29
    %v1261 = vsub.f32 0.0, %v1259
    %v1262 = vsel %vm1260, 0.0, %v1261
    %1264 = vset.pattern.permute.xlu0 0
    %1265 = vperm.xlu0 %1264, %v1262
    %v1266 = vpop.permute.xlu0 %1265
    %v1268 = vadd.f32 %v1266, 0.0
    %1269 = vst [vmem:[#allocation8] sm:$0xff] %v1268
    // Predicated region
    $region29: #{tpu_custom_call.1} parent=1 // pred_check
      _
    $region30: #{tpu_custom_call.1} parent=1 // pred_check_branch
      %1271 = sbr.rel (0) target = $region32
    $region31: #{tpu_custom_call.1} parent=1 // pred_region
      %s1273 = ssub.s32 128, 128
      %1274 = vsyncadd [#allocation7], %s1273
      %s1276 = sshll.u32 [#allocation8], 4
      %s1277 = int_to_ptr.vmem [resolvable:$true] %s1276
      %1279 = dma.vmem_to_hbm [thread:$0]  %s1277, 128, %s5, [#allocation7]
    $region32: #{tpu_custom_call.1} parent=1 // pred_fallthru
      _
    // Predicated region
    $region33: #{tpu_custom_call.1} parent=1 // pred_check
      _
    $region34: #{tpu_custom_call.1} parent=1 // pred_check_branch
      %1281 = sbr.rel (0) target = $region36
    $region35: #{tpu_custom_call.1} parent=1 // pred_region
      %1282 = dma.done [#allocation7], 128
    $region36: #{tpu_custom_call.1} parent=1 // pred_fallthru
      _
    %1283 = vsyncpa [#allocation6], 1
    %1284 = vsyncpa [#allocation7], 1

</llo_original>
